<compile_context>
chip_gen: v7x
topology: tpu7x:2x2x1
jax: 0.10.0
libtpu: 0.0.40
codegen_flags: <defaults>
</compile_context>

<pallas_src>
import math
import numpy as np

import jax
import jax.numpy as jnp
from jax.experimental import pallas as pl
from jax.experimental.pallas import tpu as pltpu

# ----------------------------------------------------------------------------
# Configuration (mirrors MMFMIL / MultiModal_Fusion_Attn_Iter hyper-params)
# ----------------------------------------------------------------------------
T, D = 8, 32                # visual_length (seq), embed_dim
H = 8                       # visual_head (num attention heads)
HD = D // H                 # per-head dim
L = 2                       # visual_layers
S = 3                       # num_refinement_steps
LAMBDA_REF = 0.5
NU = 5.0
EPSILON = 1e-8
LN_EPS = 1e-5
STUDENT_T_FACTOR = (NU + 1.0) / NU   # 'StudentT' noise model

PAIR = 2                    # batch rows handled per grid block
BT = PAIR * T               # 16 activation rows per block
MD = 2 * D                  # 64: [img | evt] packed model dim
SC = 2 * H * BT             # 256: packed score lanes (modality x head x batch x key)
WLANES = 256                # lane width of both parameter slabs

# --- bf16 weight/mask slab row offsets ---------------------------------------
OFF_KMASK = 0                       # (MD, SC)   K block-diag head/modality mask
OFF_VGMASK = OFF_KMASK + MD         # (SC, MD)   V mask == softmax group-sum matrix
OFF_WQKV = OFF_VGMASK + SC          # L x (MD, 3*MD)  block-diag QKV (Q pre-scaled)
OFF_WOUT = OFF_WQKV + MD * L        # L x (MD, MD)    block-diag out-proj
OFF_WHEADS = OFF_WOUT + MD * L      # (MD, 4*D)  [img_mu | evt_mu | img_lv | evt_lv]
OFF_WREF = OFF_WHEADS + MD          # S x (D, 2*D)    [ref_w1 | ref_w2]
W_ROWS = OFF_WREF + D * S           # 736

# --- f32 bias/LN/mask slab rows ----------------------------------------------
ROW_VALID = 0                       # (BT, SC)   same-batch validity mask
ROW_BQKV = 16                       # + l        (1, 3*MD)
ROW_BOUT = 18                       # + l        (1, MD)
ROW_LN = 20                         # layer l: gamma at +2l, beta at +2l+1 (1, MD)
ROW_WH = 24                         # whiten gamma / beta (1, MD)
ROW_BHEADS = 26                     # (1, 4*D)
ROW_BREF = 27                       # + s        (1, 2*D)
ROW_CLS = 30                        # lanes 0..D-1: cls_w, lane D: cls_b
ROW_E0 = 31                         # lane-0 indicator row
F_ROWS = 32

OUT_KEYS = ["fused", "logits", "image_mu", "event_mu",
            "image_logvar", "event_logvar", "w_i", "w_e"]


# ----------------------------------------------------------------------------
# Pallas kernel: one pair of batch rows, both modalities, full forward.
# ----------------------------------------------------------------------------
def mmfmil_kernel(x_ref, w_ref, f_ref, out_a_ref, out_b_ref):
    f32 = jnp.float32
    bf16 = jnp.bfloat16

    # Host-precomputed selector masks (no in-kernel iota construction).
    kmask = w_ref[OFF_KMASK:OFF_KMASK + MD, :]            # (64, 256) bf16
    vgmask = w_ref[OFF_VGMASK:OFF_VGMASK + SC, 0:MD]      # (256, 64) bf16
    valid = f_ref[ROW_VALID:ROW_VALID + BT, :]            # (16, 256) f32

    def ln_half(xh, gh, bh):
        mu = jnp.mean(xh, axis=-1, keepdims=True)
        var = jnp.mean((xh - mu) ** 2, axis=-1, keepdims=True)
        return (xh - mu) * jax.lax.rsqrt(var + LN_EPS) * gh + bh

    def ln_packed(x, g_row, b_row):
        # Independent LayerNorm over each 32-lane modality half of (rows, 64).
        return jnp.concatenate(
            [ln_half(x[:, :D], g_row[:, :D], b_row[:, :D]),
             ln_half(x[:, D:], g_row[:, D:], b_row[:, D:])], axis=-1)

    def mha(x, l):
        # Block-diagonal QKV for BOTH modalities in one matmul. Q is pre-scaled
        # by 1/sqrt(HD) host-side.
        wqkv = w_ref[OFF_WQKV + MD * l:OFF_WQKV + MD * (l + 1), 0:3 * MD]   # bf16
        bqkv = f_ref[ROW_BQKV + l:ROW_BQKV + l + 1, 0:3 * MD]
        qkv = jnp.dot(x.astype(bf16), wqkv, preferred_element_type=f32) + bqkv
        q = qkv[:, 0:MD]
        k = qkv[:, MD:2 * MD]
        v = qkv[:, 2 * MD:3 * MD]

        # Packed scores: all heads, both modalities, both batch rows -> 256 lanes.
        kblk = jnp.concatenate([k.T] * (2 * H), axis=1).astype(bf16) * kmask  # (64,256)
        s = jnp.dot(q.astype(bf16), kblk, preferred_element_type=f32)         # (16,256)

        # Softmax: shift-invariant global row max; cross-batch lanes zeroed.
        # (Per-group max would be more robust to extreme score ranges.)
        m = jnp.max(s, axis=-1, keepdims=True)
        p = jnp.exp(s - m) * valid
        p16 = p.astype(bf16)

        vblk = jnp.concatenate([v] * (2 * H), axis=0).astype(bf16) * vgmask   # (256,64)
        o_un = jnp.dot(p16, vblk, preferred_element_type=f32)                 # (16,64)
        gs = jnp.dot(p16, vgmask, preferred_element_type=f32)                 # per-(mod,head) sums
        o = o_un * pl.reciprocal(gs + 1e-30, approx=True)                     # normalize after P@V

        wout = w_ref[OFF_WOUT + MD * l:OFF_WOUT + MD * (l + 1), 0:MD]
        bout = f_ref[ROW_BOUT + l:ROW_BOUT + l + 1, 0:MD]
        return jnp.dot(o.astype(bf16), wout, preferred_element_type=f32) + bout

    # ------------------------- dual-modality encoder -------------------------
    x = x_ref[...]                                         # (16, 64) = [img | evt]
    for l in range(L):
        a = mha(x, l)
        g = f_ref[ROW_LN + 2 * l:ROW_LN + 2 * l + 1, 0:MD]
        b = f_ref[ROW_LN + 2 * l + 1:ROW_LN + 2 * l + 2, 0:MD]
        x = ln_packed(x + a, g, b)
    enc = ln_packed(x,
                    f_ref[ROW_WH:ROW_WH + 1, 0:MD],
                    f_ref[ROW_WH + 1:ROW_WH + 2, 0:MD])

    # ------------------ fused mu / logvar heads (one matmul) -----------------
    wh = w_ref[OFF_WHEADS:OFF_WHEADS + MD, 0:4 * D]
    bh = f_ref[ROW_BHEADS:ROW_BHEADS + 1, 0:4 * D]
    proj = jnp.dot(enc.astype(bf16), wh, preferred_element_type=f32) + bh      # (16,128)
    out_a_ref[...] = proj         # [img_mu | evt_mu | img_lv | evt_lv], lane-dense store

    img_mu = proj[:, 0:D]
    evt_mu = proj[:, D:2 * D]
    wpack = STUDENT_T_FACTOR * jnp.exp(-proj[:, 2 * D:4 * D])                  # (16,64)
    w_img = wpack[:, :D]
    w_evt = wpack[:, D:]
    inv = pl.reciprocal(w_img + w_evt + EPSILON, approx=True)
    nwi = w_img * inv
    nwe = w_evt * inv
    fused = nwi * img_mu + nwe * evt_mu

    # --------------------------- iterative refinement ------------------------
    for s_ in range(S):
        wr = w_ref[OFF_WREF + D * s_:OFF_WREF + D * (s_ + 1), 0:2 * D]         # (32,64)
        br = f_ref[ROW_BREF + s_:ROW_BREF + s_ + 1, 0:2 * D]
        h1 = jnp.maximum(
            jnp.dot(fused.astype(bf16), wr[:, 0:D], preferred_element_type=f32)
            + br[:, 0:D], 0.0)
        resid = jnp.dot(h1.astype(bf16), wr[:, D:2 * D],
                        preferred_element_type=f32) + br[:, D:2 * D]
        fused = fused - LAMBDA_REF * resid

    # ------------------ classifier (VPU multiply + lane reduce) --------------
    cls_w = f_ref[ROW_CLS:ROW_CLS + 1, 0:D]
    cls_b = f_ref[ROW_CLS:ROW_CLS + 1, D:D + 1]
    e0 = f_ref[ROW_E0:ROW_E0 + 1, 0:D]                     # 1 at lane 0
    logits = jnp.sum(fused * cls_w, axis=-1, keepdims=True) + cls_b            # (16,1)

    out_b_ref[...] = jnp.concatenate([fused, nwi, nwe, logits * e0], axis=-1)  # (16,128)


# ----------------------------------------------------------------------------
# Host-side packing of parameters + constant masks into two slabs
# ----------------------------------------------------------------------------
def pack_params(params):
    scale = 1.0 / math.sqrt(HD)
    npf = np.float32

    def a(x):
        return np.asarray(x, dtype=npf)

    def blockdiag(img_w, evt_w):
        n = img_w.shape[1]
        out = np.zeros((MD, 2 * n), npf)
        out[:D, :n] = img_w
        out[D:, n:] = evt_w
        return out

    w = np.zeros((W_ROWS, WLANES), npf)
    f = np.zeros((F_ROWS, WLANES), npf)

    # Selector masks. Packed score lane j = ((mod*H + head)*PAIR + b)*T + t.
    r = np.arange(MD)[:, None]
    jc = np.arange(SC)[None, :]
    kmask = ((r // D == jc // (H * BT)) &
             ((r % D) // HD == (jc // BT) % H)).astype(npf)
    w[OFF_KMASK:OFF_KMASK + MD, :SC] = kmask

    jr = np.arange(SC)[:, None]
    c = np.arange(MD)[None, :]
    vgmask = ((jr // (H * BT) == c // D) &
              ((jr // BT) % H == (c % D) // HD)).astype(npf)
    w[OFF_VGMASK:OFF_VGMASK + SC, :MD] = vgmask

    i = np.arange(BT)[:, None]
    f[ROW_VALID:ROW_VALID + BT, :SC] = ((i // T) == (jc // T) % PAIR).astype(npf)

    for l in range(L):
        iw, ew = a(params["img_attn_w"][l]), a(params["evt_attn_w"][l])
        ib, eb = a(params["img_attn_b"][l])[0], a(params["evt_attn_b"][l])[0]
        # column order [q_img|q_evt|k_img|k_evt|v_img|v_evt]; Q pre-scaled.
        w[OFF_WQKV + MD * l:OFF_WQKV + MD * (l + 1), :3 * MD] = np.concatenate(
            [blockdiag(iw[:, :D] * scale, ew[:, :D] * scale),
             blockdiag(iw[:, D:2 * D], ew[:, D:2 * D]),
             blockdiag(iw[:, 2 * D:], ew[:, 2 * D:])], axis=1)
        f[ROW_BQKV + l, :3 * MD] = np.concatenate(
            [ib[:D] * scale, eb[:D] * scale,
             ib[D:2 * D], eb[D:2 * D], ib[2 * D:], eb[2 * D:]])
        w[OFF_WOUT + MD * l:OFF_WOUT + MD * (l + 1), :MD] = blockdiag(
            a(params["img_out_w"][l]), a(params["evt_out_w"][l]))
        f[ROW_BOUT + l, :MD] = np.concatenate(
            [a(params["img_out_b"][l])[0], a(params["evt_out_b"][l])[0]])
        f[ROW_LN + 2 * l, :MD] = np.concatenate(
            [a(params["img_ln_g"][l])[0], a(params["evt_ln_g"][l])[0]])
        f[ROW_LN + 2 * l + 1, :MD] = np.concatenate(
            [a(params["img_ln_b"][l])[0], a(params["evt_ln_b"][l])[0]])

    f[ROW_WH, :MD] = np.concatenate([a(params["wh_img_g"])[0], a(params["wh_evt_g"])[0]])
    f[ROW_WH + 1, :MD] = np.concatenate([a(params["wh_img_b"])[0], a(params["wh_evt_b"])[0]])

    wh_ = np.zeros((MD, 4 * D), npf)
    wh_[:D, 0:D] = a(params["img_mu_w"])
    wh_[D:, D:2 * D] = a(params["evt_mu_w"])
    wh_[:D, 2 * D:3 * D] = a(params["img_lv_w"])
    wh_[D:, 3 * D:4 * D] = a(params["evt_lv_w"])
    w[OFF_WHEADS:OFF_WHEADS + MD, :4 * D] = wh_
    f[ROW_BHEADS, :4 * D] = np.concatenate(
        [a(params["img_mu_b"])[0], a(params["evt_mu_b"])[0],
         a(params["img_lv_b"])[0], a(params["evt_lv_b"])[0]])

    for s_ in range(S):
        w[OFF_WREF + D * s_:OFF_WREF + D * (s_ + 1), :2 * D] = np.concatenate(
            [a(params["ref_w1"][s_]), a(params["ref_w2"][s_])], axis=1)
        f[ROW_BREF + s_, :2 * D] = np.concatenate(
            [a(params["ref_b1"][s_])[0], a(params["ref_b2"][s_])[0]])

    f[ROW_CLS, :D] = a(params["cls_w"])[0]
    f[ROW_CLS, D] = a(params["cls_b"])[0, 0]
    f[ROW_E0, 0] = 1.0

    return jnp.asarray(w, dtype=jnp.bfloat16), jnp.asarray(f, dtype=jnp.float32)


# ----------------------------------------------------------------------------
# Wrapper
# ----------------------------------------------------------------------------
def mmfmil_forward(img, evt, packed):
    wslab, fslab = packed
    Bn, T_, D_ = img.shape
    assert T_ == T and D_ == D and Bn % PAIR == 0
    n_blk = Bn // PAIR

    # Lane-pack the modalities: (Bn*T, 2D) = [img | evt].
    x = jnp.concatenate([img.reshape(Bn * T, D), evt.reshape(Bn * T, D)], axis=-1)

    out_a, out_b = pl.pallas_call(
        mmfmil_kernel,
        out_shape=(jax.ShapeDtypeStruct((Bn * T, 4 * D), jnp.float32),
                   jax.ShapeDtypeStruct((Bn * T, 4 * D), jnp.float32)),
        grid=(n_blk,),
        in_specs=[pl.BlockSpec((BT, MD), lambda i: (i, 0)),
                  pl.BlockSpec((W_ROWS, WLANES), lambda i: (0, 0)),
                  pl.BlockSpec((F_ROWS, WLANES), lambda i: (0, 0))],
        out_specs=(pl.BlockSpec((BT, 4 * D), lambda i: (i, 0)),
                   pl.BlockSpec((BT, 4 * D), lambda i: (i, 0))),
        compiler_params=pltpu.CompilerParams(dimension_semantics=("parallel",)),
    )(x, wslab, fslab)

    a = out_a.reshape(Bn, T, 4 * D)
    b = out_b.reshape(Bn, T, 4 * D)
    return {
        "fused": b[..., 0:D],
        "logits": b[..., 3 * D:3 * D + 1],
        "image_mu": a[..., 0:D],
        "event_mu": a[..., D:2 * D],
        "image_logvar": a[..., 2 * D:3 * D],
        "event_logvar": a[..., 3 * D:4 * D],
        "w_i": b[..., D:2 * D],
        "w_e": b[..., 2 * D:3 * D],
    }


def mmfmil_apply(img_visual, ev_visual, padding_mask=None, text=None,
                 lengths=None, packed=None):
    # Mirrors MMFMIL.forward: extra args are unused; inputs cast to float.
    img = img_visual.astype(jnp.float32)
    evt = ev_visual.astype(jnp.float32)
    return mmfmil_forward(img, evt, packed)


# ----------------------------------------------------------------------------
# Deterministic synthetic parameters (same layout as the PyTorch module)
# ----------------------------------------------------------------------------
def make_params(key):
    keys = iter(jax.random.split(key, 64))

    def w(shape, scale=0.08):
        return (scale * jax.random.normal(next(keys), shape)).astype(jnp.float32)

    ones = lambda s: jnp.ones(s, jnp.float32)
    zeros = lambda s: jnp.zeros(s, jnp.float32)

    return dict(
        img_attn_w=w((L, D, 3 * D)), img_attn_b=w((L, 1, 3 * D), 0.02),
        img_out_w=w((L, D, D)), img_out_b=w((L, 1, D), 0.02),
        img_ln_g=ones((L, 1, D)), img_ln_b=zeros((L, 1, D)),
        evt_attn_w=w((L, D, 3 * D)), evt_attn_b=w((L, 1, 3 * D), 0.02),
        evt_out_w=w((L, D, D)), evt_out_b=w((L, 1, D), 0.02),
        evt_ln_g=ones((L, 1, D)), evt_ln_b=zeros((L, 1, D)),
        wh_img_g=ones((1, D)), wh_img_b=zeros((1, D)),
        wh_evt_g=ones((1, D)), wh_evt_b=zeros((1, D)),
        img_mu_w=w((D, D)), img_mu_b=w((1, D), 0.02),
        evt_mu_w=w((D, D)), evt_mu_b=w((1, D), 0.02),
        img_lv_w=w((D, D)), img_lv_b=w((1, D), 0.02),
        evt_lv_w=w((D, D)), evt_lv_b=w((1, D), 0.02),
        ref_w1=w((S, D, D)), ref_b1=w((S, 1, D), 0.02),
        ref_w2=w((S, D, D)), ref_b2=w((S, 1, D), 0.02),
        cls_w=w((1, D)), cls_b=w((1, 1), 0.02),
    )


# ----------------------------------------------------------------------------
# Pure-JAX f32 reference (PyTorch-equivalent math) for verification
# ----------------------------------------------------------------------------
def reference_forward(img, evt, params):
    Bn, T_, _ = img.shape

    def layernorm(x, g, b):
        mean = jnp.mean(x, axis=-1, keepdims=True)
        var = jnp.mean((x - mean) ** 2, axis=-1, keepdims=True)
        return (x - mean) / jnp.sqrt(var + LN_EPS) * g + b

    def mha(x, w_in, b_in, w_out, b_out):
        qkv = x @ w_in + b_in
        q, k, v = jnp.split(qkv, 3, axis=-1)
        q = q.reshape(Bn, T_, H, HD)
        k = k.reshape(Bn, T_, H, HD)
        v = v.reshape(Bn, T_, H, HD)
        s = jnp.einsum('bqhd,bkhd->bhqk', q, k) / math.sqrt(HD)
        p = jax.nn.softmax(s, axis=-1)
        o = jnp.einsum('bhqk,bkhd->bqhd', p, v).reshape(Bn, T_, D)
        return o @ w_out + b_out

    def encode(x, pre):
        for l in range(L):
            a = mha(x, params[pre + "_attn_w"][l], params[pre + "_attn_b"][l],
                    params[pre + "_out_w"][l], params[pre + "_out_b"][l])
            x = layernorm(x + a, params[pre + "_ln_g"][l], params[pre + "_ln_b"][l])
        return layernorm(x, params["wh_" + pre + "_g"], params["wh_" + pre + "_b"])

    img_enc = encode(img, "img")
    evt_enc = encode(evt, "evt")

    image_mu = img_enc @ params["img_mu_w"] + params["img_mu_b"]
    event_mu = evt_enc @ params["evt_mu_w"] + params["evt_mu_b"]
    image_lv = img_enc @ params["img_lv_w"] + params["img_lv_b"]
    event_lv = evt_enc @ params["evt_lv_w"] + params["evt_lv_b"]

    w_img = STUDENT_T_FACTOR * jnp.exp(-image_lv)
    w_evt = STUDENT_T_FACTOR * jnp.exp(-event_lv)
    denom = w_img + w_evt + EPSILON
    nwi = w_img / denom
    nwe = w_evt / denom
    fused = nwi * image_mu + nwe * event_mu

    for s_ in range(S):
        h1 = jax.nn.relu(fused @ params["ref_w1"][s_] + params["ref_b1"][s_])
        resid = h1 @ params["ref_w2"][s_] + params["ref_b2"][s_]
        fused = fused - LAMBDA_REF * resid

    logits = fused @ params["cls_w"].T + params["cls_b"]
    return dict(zip(OUT_KEYS,
                    (fused, logits, image_mu, event_mu, image_lv, event_lv, nwi, nwe)))


if __name__ == "__main__":
    key = jax.random.PRNGKey(0)
    k_img, k_evt, k_par = jax.random.split(key, 3)
    params = make_params(k_par)
    packed = pack_params(params)

    # B=2 is the spec'd shape; B=4 additionally exercises the parallel grid
    # (two blocks -> both TensorCores on v7x).
    for Bn in (2, 4):
        img_visual = jax.random.normal(jax.random.fold_in(k_img, Bn), (Bn, T, D), jnp.float32)
        ev_visual = jax.random.normal(jax.random.fold_in(k_evt, Bn), (Bn, T, D), jnp.float32)

        out = mmfmil_apply(img_visual, ev_visual, padding_mask=None, text=None,
                           lengths=None, packed=packed)
        jax.block_until_ready(out)

        ref = reference_forward(img_visual, ev_visual, params)
        # Tolerance: bf16 MXU operands (f32 accumulation) + EUP approx
        # reciprocals give ~1e-3..5e-3 deviations vs. the exact f32 reference;
        # structural bugs would be orders of magnitude larger.
        for name in OUT_KEYS:
            assert out[name].shape == ref[name].shape, (Bn, name, out[name].shape)
            assert jnp.allclose(out[name], ref[name], atol=2e-2, rtol=2e-2), (Bn, name)

    print("KERNEL_OK")
</pallas_src>

<mosaic_0001>
module attributes {stable_mosaic.version = 11 : i64} {
  func.func @mmfmil_kernel(%arg0: i32, %arg1: memref<16x64xf32, #tpu.memory_space<vmem>>, %arg2: memref<736x256xbf16, #tpu.memory_space<vmem>>, %arg3: memref<32x256xf32, #tpu.memory_space<vmem>>, %arg4: memref<16x128xf32, #tpu.memory_space<vmem>>, %arg5: memref<16x128xf32, #tpu.memory_space<vmem>>) attributes {dimension_semantics = [#tpu.dimension_semantics<parallel>], iteration_bounds = array<i64: 1>, scalar_prefetch = 0 : i64, scratch_operands = 0 : i64, tpu.core_type = #tpu.core_type<tc>, window_params = [{transform_indices = @transform_0, window_bounds = array<i64: 16, 64>}, {pipeline_mode = #tpu.pipeline_mode<synchronous>, transform_indices = @transform_1, window_bounds = array<i64: 736, 256>}, {pipeline_mode = #tpu.pipeline_mode<synchronous>, transform_indices = @transform_2, window_bounds = array<i64: 32, 256>}, {transform_indices = @transform_3, window_bounds = array<i64: 16, 128>}, {transform_indices = @transform_4, window_bounds = array<i64: 16, 128>}]} {
    %c0 = arith.constant 0 : index
    %c0_0 = arith.constant 0 : index
    %0 = vector.load %arg2[%c0, %c0_0] : memref<736x256xbf16, #tpu.memory_space<vmem>>, vector<64x256xbf16>
    %c64 = arith.constant 64 : index
    %c0_1 = arith.constant 0 : index
    %1 = vector.load %arg2[%c64, %c0_1] : memref<736x256xbf16, #tpu.memory_space<vmem>>, vector<256x64xbf16>
    %c0_2 = arith.constant 0 : index
    %c0_3 = arith.constant 0 : index
    %2 = vector.load %arg3[%c0_2, %c0_3] : memref<32x256xf32, #tpu.memory_space<vmem>>, vector<16x256xf32>
    %c0_4 = arith.constant 0 : index
    %c0_5 = arith.constant 0 : index
    %3 = vector.load %arg1[%c0_4, %c0_5] : memref<16x64xf32, #tpu.memory_space<vmem>>, vector<16x64xf32>
    %c320 = arith.constant 320 : index
    %c0_6 = arith.constant 0 : index
    %4 = vector.load %arg2[%c320, %c0_6] : memref<736x256xbf16, #tpu.memory_space<vmem>>, vector<64x192xbf16>
    %c16 = arith.constant 16 : index
    %c0_7 = arith.constant 0 : index
    %5 = vector.load %arg3[%c16, %c0_7] : memref<32x256xf32, #tpu.memory_space<vmem>>, vector<1x192xf32>
    %6 = arith.truncf %3 : vector<16x64xf32> to vector<16x64xbf16>
    %cst = arith.constant dense<0.000000e+00> : vector<16x192xf32>
    %7 = tpu.matmul %6, %4, %cst {dimension_numbers = #tpu.dot_dimension_numbers<[1], [0], [0], [1], [0, 0, 1, 1], [], []>} : vector<16x64xbf16>, vector<64x192xbf16>, vector<16x192xf32> -> vector<16x192xf32>
    %8 = vector.broadcast %5 : vector<1x192xf32> to vector<16x192xf32>
    %9 = arith.addf %7, %8 : vector<16x192xf32>
    %10 = vector.extract_strided_slice %9 {offsets = [0, 0], sizes = [16, 64], strides = [1, 1]} : vector<16x192xf32> to vector<16x64xf32>
    %11 = vector.extract_strided_slice %9 {offsets = [0, 64], sizes = [16, 64], strides = [1, 1]} : vector<16x192xf32> to vector<16x64xf32>
    %12 = vector.extract_strided_slice %9 {offsets = [0, 128], sizes = [16, 64], strides = [1, 1]} : vector<16x192xf32> to vector<16x64xf32>
    %13 = tpu.transpose %11, [1, 0] : vector<16x64xf32> -> vector<64x16xf32>
    %14 = tpu.concatenate %13, %13, %13, %13, %13, %13, %13, %13, %13, %13, %13, %13, %13, %13, %13, %13 in 1 : vector<64x16xf32>, vector<64x16xf32>, vector<64x16xf32>, vector<64x16xf32>, vector<64x16xf32>, vector<64x16xf32>, vector<64x16xf32>, vector<64x16xf32>, vector<64x16xf32>, vector<64x16xf32>, vector<64x16xf32>, vector<64x16xf32>, vector<64x16xf32>, vector<64x16xf32>, vector<64x16xf32>, vector<64x16xf32> -> vector<64x256xf32>
    %15 = arith.truncf %14 : vector<64x256xf32> to vector<64x256xbf16>
    %16 = arith.mulf %15, %0 : vector<64x256xbf16>
    %17 = arith.truncf %10 : vector<16x64xf32> to vector<16x64xbf16>
    %cst_8 = arith.constant dense<0.000000e+00> : vector<16x256xf32>
    %18 = tpu.matmul %17, %16, %cst_8 {dimension_numbers = #tpu.dot_dimension_numbers<[1], [0], [0], [1], [0, 0, 1, 1], [], []>} : vector<16x64xbf16>, vector<64x256xbf16>, vector<16x256xf32> -> vector<16x256xf32>
    %cst_9 = arith.constant dense<0xFF800000> : vector<16xf32>
    %19 = vector.multi_reduction <maximumf>, %18, %cst_9 [1] : vector<16x256xf32> to vector<16xf32>
    %20 = vector.shape_cast %19 : vector<16xf32> to vector<16x1xf32>
    %21 = vector.broadcast %20 : vector<16x1xf32> to vector<16x256xf32>
    %22 = arith.subf %18, %21 : vector<16x256xf32>
    %23 = math.exp %22 : vector<16x256xf32>
    %24 = arith.mulf %23, %2 : vector<16x256xf32>
    %25 = arith.truncf %24 : vector<16x256xf32> to vector<16x256xbf16>
    %26 = tpu.concatenate %12, %12, %12, %12, %12, %12, %12, %12, %12, %12, %12, %12, %12, %12, %12, %12 in 0 : vector<16x64xf32>, vector<16x64xf32>, vector<16x64xf32>, vector<16x64xf32>, vector<16x64xf32>, vector<16x64xf32>, vector<16x64xf32>, vector<16x64xf32>, vector<16x64xf32>, vector<16x64xf32>, vector<16x64xf32>, vector<16x64xf32>, vector<16x64xf32>, vector<16x64xf32>, vector<16x64xf32>, vector<16x64xf32> -> vector<256x64xf32>
    %27 = arith.truncf %26 : vector<256x64xf32> to vector<256x64xbf16>
    %28 = arith.mulf %27, %1 : vector<256x64xbf16>
    %cst_10 = arith.constant dense<0.000000e+00> : vector<16x64xf32>
    %29 = tpu.matmul %25, %28, %cst_10 {dimension_numbers = #tpu.dot_dimension_numbers<[1], [0], [0], [1], [0, 0, 1, 1], [], []>} : vector<16x256xbf16>, vector<256x64xbf16>, vector<16x64xf32> -> vector<16x64xf32>
    %cst_11 = arith.constant dense<0.000000e+00> : vector<16x64xf32>
    %30 = tpu.matmul %25, %1, %cst_11 {dimension_numbers = #tpu.dot_dimension_numbers<[1], [0], [0], [1], [0, 0, 1, 1], [], []>} : vector<16x256xbf16>, vector<256x64xbf16>, vector<16x64xf32> -> vector<16x64xf32>
    %cst_12 = arith.constant 1.000000e-30 : f32
    %31 = vector.broadcast %cst_12 : f32 to vector<16x64xf32>
    %32 = arith.addf %30, %31 : vector<16x64xf32>
    %33 = tpu.reciprocal %32 {approx = true} : vector<16x64xf32> -> vector<16x64xf32>
    %34 = arith.mulf %29, %33 : vector<16x64xf32>
    %c448 = arith.constant 448 : index
    %c0_13 = arith.constant 0 : index
    %35 = vector.load %arg2[%c448, %c0_13] : memref<736x256xbf16, #tpu.memory_space<vmem>>, vector<64x64xbf16>
    %c18 = arith.constant 18 : index
    %c0_14 = arith.constant 0 : index
    %36 = vector.load %arg3[%c18, %c0_14] : memref<32x256xf32, #tpu.memory_space<vmem>>, vector<1x64xf32>
    %37 = arith.truncf %34 : vector<16x64xf32> to vector<16x64xbf16>
    %cst_15 = arith.constant dense<0.000000e+00> : vector<16x64xf32>
    %38 = tpu.matmul %37, %35, %cst_15 {dimension_numbers = #tpu.dot_dimension_numbers<[1], [0], [0], [1], [0, 0, 1, 1], [], []>} : vector<16x64xbf16>, vector<64x64xbf16>, vector<16x64xf32> -> vector<16x64xf32>
    %39 = vector.broadcast %36 : vector<1x64xf32> to vector<16x64xf32>
    %40 = arith.addf %38, %39 : vector<16x64xf32>
    %c20 = arith.constant 20 : index
    %c0_16 = arith.constant 0 : index
    %41 = vector.load %arg3[%c20, %c0_16] : memref<32x256xf32, #tpu.memory_space<vmem>>, vector<1x64xf32>
    %c21 = arith.constant 21 : index
    %c0_17 = arith.constant 0 : index
    %42 = vector.load %arg3[%c21, %c0_17] : memref<32x256xf32, #tpu.memory_space<vmem>>, vector<1x64xf32>
    %43 = arith.addf %3, %40 : vector<16x64xf32>
    %44 = vector.extract_strided_slice %43 {offsets = [0, 0], sizes = [16, 32], strides = [1, 1]} : vector<16x64xf32> to vector<16x32xf32>
    %45 = vector.extract_strided_slice %41 {offsets = [0, 0], sizes = [1, 32], strides = [1, 1]} : vector<1x64xf32> to vector<1x32xf32>
    %46 = vector.extract_strided_slice %42 {offsets = [0, 0], sizes = [1, 32], strides = [1, 1]} : vector<1x64xf32> to vector<1x32xf32>
    %cst_18 = arith.constant dense<0.000000e+00> : vector<16xf32>
    %47 = vector.multi_reduction <add>, %44, %cst_18 [1] : vector<16x32xf32> to vector<16xf32>
    %48 = vector.shape_cast %47 : vector<16xf32> to vector<16x1xf32>
    %cst_19 = arith.constant 3.200000e+01 : f32
    %49 = vector.broadcast %cst_19 : f32 to vector<16x1xf32>
    %50 = arith.divf %48, %49 : vector<16x1xf32>
    %51 = vector.broadcast %50 : vector<16x1xf32> to vector<16x32xf32>
    %52 = arith.subf %44, %51 : vector<16x32xf32>
    %53 = arith.mulf %52, %52 : vector<16x32xf32>
    %cst_20 = arith.constant dense<0.000000e+00> : vector<16xf32>
    %54 = vector.multi_reduction <add>, %53, %cst_20 [1] : vector<16x32xf32> to vector<16xf32>
    %55 = vector.shape_cast %54 : vector<16xf32> to vector<16x1xf32>
    %cst_21 = arith.constant 3.200000e+01 : f32
    %56 = vector.broadcast %cst_21 : f32 to vector<16x1xf32>
    %57 = arith.divf %55, %56 : vector<16x1xf32>
    %58 = vector.broadcast %50 : vector<16x1xf32> to vector<16x32xf32>
    %59 = arith.subf %44, %58 : vector<16x32xf32>
    %cst_22 = arith.constant 9.99999974E-6 : f32
    %60 = vector.broadcast %cst_22 : f32 to vector<16x1xf32>
    %61 = arith.addf %57, %60 : vector<16x1xf32>
    %62 = math.rsqrt %61 : vector<16x1xf32>
    %63 = vector.broadcast %62 : vector<16x1xf32> to vector<16x32xf32>
    %64 = arith.mulf %59, %63 : vector<16x32xf32>
    %65 = vector.broadcast %45 : vector<1x32xf32> to vector<16x32xf32>
    %66 = arith.mulf %64, %65 : vector<16x32xf32>
    %67 = vector.broadcast %46 : vector<1x32xf32> to vector<16x32xf32>
    %68 = arith.addf %66, %67 : vector<16x32xf32>
    %69 = vector.extract_strided_slice %43 {offsets = [0, 32], sizes = [16, 32], strides = [1, 1]} : vector<16x64xf32> to vector<16x32xf32>
    %70 = vector.extract_strided_slice %41 {offsets = [0, 32], sizes = [1, 32], strides = [1, 1]} : vector<1x64xf32> to vector<1x32xf32>
    %71 = vector.extract_strided_slice %42 {offsets = [0, 32], sizes = [1, 32], strides = [1, 1]} : vector<1x64xf32> to vector<1x32xf32>
    %cst_23 = arith.constant dense<0.000000e+00> : vector<16xf32>
    %72 = vector.multi_reduction <add>, %69, %cst_23 [1] : vector<16x32xf32> to vector<16xf32>
    %73 = vector.shape_cast %72 : vector<16xf32> to vector<16x1xf32>
    %cst_24 = arith.constant 3.200000e+01 : f32
    %74 = vector.broadcast %cst_24 : f32 to vector<16x1xf32>
    %75 = arith.divf %73, %74 : vector<16x1xf32>
    %76 = vector.broadcast %75 : vector<16x1xf32> to vector<16x32xf32>
    %77 = arith.subf %69, %76 : vector<16x32xf32>
    %78 = arith.mulf %77, %77 : vector<16x32xf32>
    %cst_25 = arith.constant dense<0.000000e+00> : vector<16xf32>
    %79 = vector.multi_reduction <add>, %78, %cst_25 [1] : vector<16x32xf32> to vector<16xf32>
    %80 = vector.shape_cast %79 : vector<16xf32> to vector<16x1xf32>
    %cst_26 = arith.constant 3.200000e+01 : f32
    %81 = vector.broadcast %cst_26 : f32 to vector<16x1xf32>
    %82 = arith.divf %80, %81 : vector<16x1xf32>
    %83 = vector.broadcast %75 : vector<16x1xf32> to vector<16x32xf32>
    %84 = arith.subf %69, %83 : vector<16x32xf32>
    %cst_27 = arith.constant 9.99999974E-6 : f32
    %85 = vector.broadcast %cst_27 : f32 to vector<16x1xf32>
    %86 = arith.addf %82, %85 : vector<16x1xf32>
    %87 = math.rsqrt %86 : vector<16x1xf32>
    %88 = vector.broadcast %87 : vector<16x1xf32> to vector<16x32xf32>
    %89 = arith.mulf %84, %88 : vector<16x32xf32>
    %90 = vector.broadcast %70 : vector<1x32xf32> to vector<16x32xf32>
    %91 = arith.mulf %89, %90 : vector<16x32xf32>
    %92 = vector.broadcast %71 : vector<1x32xf32> to vector<16x32xf32>
    %93 = arith.addf %91, %92 : vector<16x32xf32>
    %94 = tpu.concatenate %68, %93 in 1 : vector<16x32xf32>, vector<16x32xf32> -> vector<16x64xf32>
    %c384 = arith.constant 384 : index
    %c0_28 = arith.constant 0 : index
    %95 = vector.load %arg2[%c384, %c0_28] : memref<736x256xbf16, #tpu.memory_space<vmem>>, vector<64x192xbf16>
    %c17 = arith.constant 17 : index
    %c0_29 = arith.constant 0 : index
    %96 = vector.load %arg3[%c17, %c0_29] : memref<32x256xf32, #tpu.memory_space<vmem>>, vector<1x192xf32>
    %97 = arith.truncf %94 : vector<16x64xf32> to vector<16x64xbf16>
    %cst_30 = arith.constant dense<0.000000e+00> : vector<16x192xf32>
    %98 = tpu.matmul %97, %95, %cst_30 {dimension_numbers = #tpu.dot_dimension_numbers<[1], [0], [0], [1], [0, 0, 1, 1], [], []>} : vector<16x64xbf16>, vector<64x192xbf16>, vector<16x192xf32> -> vector<16x192xf32>
    %99 = vector.broadcast %96 : vector<1x192xf32> to vector<16x192xf32>
    %100 = arith.addf %98, %99 : vector<16x192xf32>
    %101 = vector.extract_strided_slice %100 {offsets = [0, 0], sizes = [16, 64], strides = [1, 1]} : vector<16x192xf32> to vector<16x64xf32>
    %102 = vector.extract_strided_slice %100 {offsets = [0, 64], sizes = [16, 64], strides = [1, 1]} : vector<16x192xf32> to vector<16x64xf32>
    %103 = vector.extract_strided_slice %100 {offsets = [0, 128], sizes = [16, 64], strides = [1, 1]} : vector<16x192xf32> to vector<16x64xf32>
    %104 = tpu.transpose %102, [1, 0] : vector<16x64xf32> -> vector<64x16xf32>
    %105 = tpu.concatenate %104, %104, %104, %104, %104, %104, %104, %104, %104, %104, %104, %104, %104, %104, %104, %104 in 1 : vector<64x16xf32>, vector<64x16xf32>, vector<64x16xf32>, vector<64x16xf32>, vector<64x16xf32>, vector<64x16xf32>, vector<64x16xf32>, vector<64x16xf32>, vector<64x16xf32>, vector<64x16xf32>, vector<64x16xf32>, vector<64x16xf32>, vector<64x16xf32>, vector<64x16xf32>, vector<64x16xf32>, vector<64x16xf32> -> vector<64x256xf32>
    %106 = arith.truncf %105 : vector<64x256xf32> to vector<64x256xbf16>
    %107 = arith.mulf %106, %0 : vector<64x256xbf16>
    %108 = arith.truncf %101 : vector<16x64xf32> to vector<16x64xbf16>
    %cst_31 = arith.constant dense<0.000000e+00> : vector<16x256xf32>
    %109 = tpu.matmul %108, %107, %cst_31 {dimension_numbers = #tpu.dot_dimension_numbers<[1], [0], [0], [1], [0, 0, 1, 1], [], []>} : vector<16x64xbf16>, vector<64x256xbf16>, vector<16x256xf32> -> vector<16x256xf32>
    %cst_32 = arith.constant dense<0xFF800000> : vector<16xf32>
    %110 = vector.multi_reduction <maximumf>, %109, %cst_32 [1] : vector<16x256xf32> to vector<16xf32>
    %111 = vector.shape_cast %110 : vector<16xf32> to vector<16x1xf32>
    %112 = vector.broadcast %111 : vector<16x1xf32> to vector<16x256xf32>
    %113 = arith.subf %109, %112 : vector<16x256xf32>
    %114 = math.exp %113 : vector<16x256xf32>
    %115 = arith.mulf %114, %2 : vector<16x256xf32>
    %116 = arith.truncf %115 : vector<16x256xf32> to vector<16x256xbf16>
    %117 = tpu.concatenate %103, %103, %103, %103, %103, %103, %103, %103, %103, %103, %103, %103, %103, %103, %103, %103 in 0 : vector<16x64xf32>, vector<16x64xf32>, vector<16x64xf32>, vector<16x64xf32>, vector<16x64xf32>, vector<16x64xf32>, vector<16x64xf32>, vector<16x64xf32>, vector<16x64xf32>, vector<16x64xf32>, vector<16x64xf32>, vector<16x64xf32>, vector<16x64xf32>, vector<16x64xf32>, vector<16x64xf32>, vector<16x64xf32> -> vector<256x64xf32>
    %118 = arith.truncf %117 : vector<256x64xf32> to vector<256x64xbf16>
    %119 = arith.mulf %118, %1 : vector<256x64xbf16>
    %cst_33 = arith.constant dense<0.000000e+00> : vector<16x64xf32>
    %120 = tpu.matmul %116, %119, %cst_33 {dimension_numbers = #tpu.dot_dimension_numbers<[1], [0], [0], [1], [0, 0, 1, 1], [], []>} : vector<16x256xbf16>, vector<256x64xbf16>, vector<16x64xf32> -> vector<16x64xf32>
    %cst_34 = arith.constant dense<0.000000e+00> : vector<16x64xf32>
    %121 = tpu.matmul %116, %1, %cst_34 {dimension_numbers = #tpu.dot_dimension_numbers<[1], [0], [0], [1], [0, 0, 1, 1], [], []>} : vector<16x256xbf16>, vector<256x64xbf16>, vector<16x64xf32> -> vector<16x64xf32>
    %cst_35 = arith.constant 1.000000e-30 : f32
    %122 = vector.broadcast %cst_35 : f32 to vector<16x64xf32>
    %123 = arith.addf %121, %122 : vector<16x64xf32>
    %124 = tpu.reciprocal %123 {approx = true} : vector<16x64xf32> -> vector<16x64xf32>
    %125 = arith.mulf %120, %124 : vector<16x64xf32>
    %c512 = arith.constant 512 : index
    %c0_36 = arith.constant 0 : index
    %126 = vector.load %arg2[%c512, %c0_36] : memref<736x256xbf16, #tpu.memory_space<vmem>>, vector<64x64xbf16>
    %c19 = arith.constant 19 : index
    %c0_37 = arith.constant 0 : index
    %127 = vector.load %arg3[%c19, %c0_37] : memref<32x256xf32, #tpu.memory_space<vmem>>, vector<1x64xf32>
    %128 = arith.truncf %125 : vector<16x64xf32> to vector<16x64xbf16>
    %cst_38 = arith.constant dense<0.000000e+00> : vector<16x64xf32>
    %129 = tpu.matmul %128, %126, %cst_38 {dimension_numbers = #tpu.dot_dimension_numbers<[1], [0], [0], [1], [0, 0, 1, 1], [], []>} : vector<16x64xbf16>, vector<64x64xbf16>, vector<16x64xf32> -> vector<16x64xf32>
    %130 = vector.broadcast %127 : vector<1x64xf32> to vector<16x64xf32>
    %131 = arith.addf %129, %130 : vector<16x64xf32>
    %c22 = arith.constant 22 : index
    %c0_39 = arith.constant 0 : index
    %132 = vector.load %arg3[%c22, %c0_39] : memref<32x256xf32, #tpu.memory_space<vmem>>, vector<1x64xf32>
    %c23 = arith.constant 23 : index
    %c0_40 = arith.constant 0 : index
    %133 = vector.load %arg3[%c23, %c0_40] : memref<32x256xf32, #tpu.memory_space<vmem>>, vector<1x64xf32>
    %134 = arith.addf %94, %131 : vector<16x64xf32>
    %135 = vector.extract_strided_slice %134 {offsets = [0, 0], sizes = [16, 32], strides = [1, 1]} : vector<16x64xf32> to vector<16x32xf32>
    %136 = vector.extract_strided_slice %132 {offsets = [0, 0], sizes = [1, 32], strides = [1, 1]} : vector<1x64xf32> to vector<1x32xf32>
    %137 = vector.extract_strided_slice %133 {offsets = [0, 0], sizes = [1, 32], strides = [1, 1]} : vector<1x64xf32> to vector<1x32xf32>
    %cst_41 = arith.constant dense<0.000000e+00> : vector<16xf32>
    %138 = vector.multi_reduction <add>, %135, %cst_41 [1] : vector<16x32xf32> to vector<16xf32>
    %139 = vector.shape_cast %138 : vector<16xf32> to vector<16x1xf32>
    %cst_42 = arith.constant 3.200000e+01 : f32
    %140 = vector.broadcast %cst_42 : f32 to vector<16x1xf32>
    %141 = arith.divf %139, %140 : vector<16x1xf32>
    %142 = vector.broadcast %141 : vector<16x1xf32> to vector<16x32xf32>
    %143 = arith.subf %135, %142 : vector<16x32xf32>
    %144 = arith.mulf %143, %143 : vector<16x32xf32>
    %cst_43 = arith.constant dense<0.000000e+00> : vector<16xf32>
    %145 = vector.multi_reduction <add>, %144, %cst_43 [1] : vector<16x32xf32> to vector<16xf32>
    %146 = vector.shape_cast %145 : vector<16xf32> to vector<16x1xf32>
    %cst_44 = arith.constant 3.200000e+01 : f32
    %147 = vector.broadcast %cst_44 : f32 to vector<16x1xf32>
    %148 = arith.divf %146, %147 : vector<16x1xf32>
    %149 = vector.broadcast %141 : vector<16x1xf32> to vector<16x32xf32>
    %150 = arith.subf %135, %149 : vector<16x32xf32>
    %cst_45 = arith.constant 9.99999974E-6 : f32
    %151 = vector.broadcast %cst_45 : f32 to vector<16x1xf32>
    %152 = arith.addf %148, %151 : vector<16x1xf32>
    %153 = math.rsqrt %152 : vector<16x1xf32>
    %154 = vector.broadcast %153 : vector<16x1xf32> to vector<16x32xf32>
    %155 = arith.mulf %150, %154 : vector<16x32xf32>
    %156 = vector.broadcast %136 : vector<1x32xf32> to vector<16x32xf32>
    %157 = arith.mulf %155, %156 : vector<16x32xf32>
    %158 = vector.broadcast %137 : vector<1x32xf32> to vector<16x32xf32>
    %159 = arith.addf %157, %158 : vector<16x32xf32>
    %160 = vector.extract_strided_slice %134 {offsets = [0, 32], sizes = [16, 32], strides = [1, 1]} : vector<16x64xf32> to vector<16x32xf32>
    %161 = vector.extract_strided_slice %132 {offsets = [0, 32], sizes = [1, 32], strides = [1, 1]} : vector<1x64xf32> to vector<1x32xf32>
    %162 = vector.extract_strided_slice %133 {offsets = [0, 32], sizes = [1, 32], strides = [1, 1]} : vector<1x64xf32> to vector<1x32xf32>
    %cst_46 = arith.constant dense<0.000000e+00> : vector<16xf32>
    %163 = vector.multi_reduction <add>, %160, %cst_46 [1] : vector<16x32xf32> to vector<16xf32>
    %164 = vector.shape_cast %163 : vector<16xf32> to vector<16x1xf32>
    %cst_47 = arith.constant 3.200000e+01 : f32
    %165 = vector.broadcast %cst_47 : f32 to vector<16x1xf32>
    %166 = arith.divf %164, %165 : vector<16x1xf32>
    %167 = vector.broadcast %166 : vector<16x1xf32> to vector<16x32xf32>
    %168 = arith.subf %160, %167 : vector<16x32xf32>
    %169 = arith.mulf %168, %168 : vector<16x32xf32>
    %cst_48 = arith.constant dense<0.000000e+00> : vector<16xf32>
    %170 = vector.multi_reduction <add>, %169, %cst_48 [1] : vector<16x32xf32> to vector<16xf32>
    %171 = vector.shape_cast %170 : vector<16xf32> to vector<16x1xf32>
    %cst_49 = arith.constant 3.200000e+01 : f32
    %172 = vector.broadcast %cst_49 : f32 to vector<16x1xf32>
    %173 = arith.divf %171, %172 : vector<16x1xf32>
    %174 = vector.broadcast %166 : vector<16x1xf32> to vector<16x32xf32>
    %175 = arith.subf %160, %174 : vector<16x32xf32>
    %cst_50 = arith.constant 9.99999974E-6 : f32
    %176 = vector.broadcast %cst_50 : f32 to vector<16x1xf32>
    %177 = arith.addf %173, %176 : vector<16x1xf32>
    %178 = math.rsqrt %177 : vector<16x1xf32>
    %179 = vector.broadcast %178 : vector<16x1xf32> to vector<16x32xf32>
    %180 = arith.mulf %175, %179 : vector<16x32xf32>
    %181 = vector.broadcast %161 : vector<1x32xf32> to vector<16x32xf32>
    %182 = arith.mulf %180, %181 : vector<16x32xf32>
    %183 = vector.broadcast %162 : vector<1x32xf32> to vector<16x32xf32>
    %184 = arith.addf %182, %183 : vector<16x32xf32>
    %185 = tpu.concatenate %159, %184 in 1 : vector<16x32xf32>, vector<16x32xf32> -> vector<16x64xf32>
    %c24 = arith.constant 24 : index
    %c0_51 = arith.constant 0 : index
    %186 = vector.load %arg3[%c24, %c0_51] : memref<32x256xf32, #tpu.memory_space<vmem>>, vector<1x64xf32>
    %c25 = arith.constant 25 : index
    %c0_52 = arith.constant 0 : index
    %187 = vector.load %arg3[%c25, %c0_52] : memref<32x256xf32, #tpu.memory_space<vmem>>, vector<1x64xf32>
    %188 = vector.extract_strided_slice %185 {offsets = [0, 0], sizes = [16, 32], strides = [1, 1]} : vector<16x64xf32> to vector<16x32xf32>
    %189 = vector.extract_strided_slice %186 {offsets = [0, 0], sizes = [1, 32], strides = [1, 1]} : vector<1x64xf32> to vector<1x32xf32>
    %190 = vector.extract_strided_slice %187 {offsets = [0, 0], sizes = [1, 32], strides = [1, 1]} : vector<1x64xf32> to vector<1x32xf32>
    %cst_53 = arith.constant dense<0.000000e+00> : vector<16xf32>
    %191 = vector.multi_reduction <add>, %188, %cst_53 [1] : vector<16x32xf32> to vector<16xf32>
    %192 = vector.shape_cast %191 : vector<16xf32> to vector<16x1xf32>
    %cst_54 = arith.constant 3.200000e+01 : f32
    %193 = vector.broadcast %cst_54 : f32 to vector<16x1xf32>
    %194 = arith.divf %192, %193 : vector<16x1xf32>
    %195 = vector.broadcast %194 : vector<16x1xf32> to vector<16x32xf32>
    %196 = arith.subf %188, %195 : vector<16x32xf32>
    %197 = arith.mulf %196, %196 : vector<16x32xf32>
    %cst_55 = arith.constant dense<0.000000e+00> : vector<16xf32>
    %198 = vector.multi_reduction <add>, %197, %cst_55 [1] : vector<16x32xf32> to vector<16xf32>
    %199 = vector.shape_cast %198 : vector<16xf32> to vector<16x1xf32>
    %cst_56 = arith.constant 3.200000e+01 : f32
    %200 = vector.broadcast %cst_56 : f32 to vector<16x1xf32>
    %201 = arith.divf %199, %200 : vector<16x1xf32>
    %202 = vector.broadcast %194 : vector<16x1xf32> to vector<16x32xf32>
    %203 = arith.subf %188, %202 : vector<16x32xf32>
    %cst_57 = arith.constant 9.99999974E-6 : f32
    %204 = vector.broadcast %cst_57 : f32 to vector<16x1xf32>
    %205 = arith.addf %201, %204 : vector<16x1xf32>
    %206 = math.rsqrt %205 : vector<16x1xf32>
    %207 = vector.broadcast %206 : vector<16x1xf32> to vector<16x32xf32>
    %208 = arith.mulf %203, %207 : vector<16x32xf32>
    %209 = vector.broadcast %189 : vector<1x32xf32> to vector<16x32xf32>
    %210 = arith.mulf %208, %209 : vector<16x32xf32>
    %211 = vector.broadcast %190 : vector<1x32xf32> to vector<16x32xf32>
    %212 = arith.addf %210, %211 : vector<16x32xf32>
    %213 = vector.extract_strided_slice %185 {offsets = [0, 32], sizes = [16, 32], strides = [1, 1]} : vector<16x64xf32> to vector<16x32xf32>
    %214 = vector.extract_strided_slice %186 {offsets = [0, 32], sizes = [1, 32], strides = [1, 1]} : vector<1x64xf32> to vector<1x32xf32>
    %215 = vector.extract_strided_slice %187 {offsets = [0, 32], sizes = [1, 32], strides = [1, 1]} : vector<1x64xf32> to vector<1x32xf32>
    %cst_58 = arith.constant dense<0.000000e+00> : vector<16xf32>
    %216 = vector.multi_reduction <add>, %213, %cst_58 [1] : vector<16x32xf32> to vector<16xf32>
    %217 = vector.shape_cast %216 : vector<16xf32> to vector<16x1xf32>
    %cst_59 = arith.constant 3.200000e+01 : f32
    %218 = vector.broadcast %cst_59 : f32 to vector<16x1xf32>
    %219 = arith.divf %217, %218 : vector<16x1xf32>
    %220 = vector.broadcast %219 : vector<16x1xf32> to vector<16x32xf32>
    %221 = arith.subf %213, %220 : vector<16x32xf32>
    %222 = arith.mulf %221, %221 : vector<16x32xf32>
    %cst_60 = arith.constant dense<0.000000e+00> : vector<16xf32>
    %223 = vector.multi_reduction <add>, %222, %cst_60 [1] : vector<16x32xf32> to vector<16xf32>
    %224 = vector.shape_cast %223 : vector<16xf32> to vector<16x1xf32>
    %cst_61 = arith.constant 3.200000e+01 : f32
    %225 = vector.broadcast %cst_61 : f32 to vector<16x1xf32>
    %226 = arith.divf %224, %225 : vector<16x1xf32>
    %227 = vector.broadcast %219 : vector<16x1xf32> to vector<16x32xf32>
    %228 = arith.subf %213, %227 : vector<16x32xf32>
    %cst_62 = arith.constant 9.99999974E-6 : f32
    %229 = vector.broadcast %cst_62 : f32 to vector<16x1xf32>
    %230 = arith.addf %226, %229 : vector<16x1xf32>
    %231 = math.rsqrt %230 : vector<16x1xf32>
    %232 = vector.broadcast %231 : vector<16x1xf32> to vector<16x32xf32>
    %233 = arith.mulf %228, %232 : vector<16x32xf32>
    %234 = vector.broadcast %214 : vector<1x32xf32> to vector<16x32xf32>
    %235 = arith.mulf %233, %234 : vector<16x32xf32>
    %236 = vector.broadcast %215 : vector<1x32xf32> to vector<16x32xf32>
    %237 = arith.addf %235, %236 : vector<16x32xf32>
    %238 = tpu.concatenate %212, %237 in 1 : vector<16x32xf32>, vector<16x32xf32> -> vector<16x64xf32>
    %c576 = arith.constant 576 : index
    %c0_63 = arith.constant 0 : index
    %239 = vector.load %arg2[%c576, %c0_63] : memref<736x256xbf16, #tpu.memory_space<vmem>>, vector<64x128xbf16>
    %c26 = arith.constant 26 : index
    %c0_64 = arith.constant 0 : index
    %240 = vector.load %arg3[%c26, %c0_64] : memref<32x256xf32, #tpu.memory_space<vmem>>, vector<1x128xf32>
    %241 = arith.truncf %238 : vector<16x64xf32> to vector<16x64xbf16>
    %cst_65 = arith.constant dense<0.000000e+00> : vector<16x128xf32>
    %242 = tpu.matmul %241, %239, %cst_65 {dimension_numbers = #tpu.dot_dimension_numbers<[1], [0], [0], [1], [0, 0, 1, 1], [], []>} : vector<16x64xbf16>, vector<64x128xbf16>, vector<16x128xf32> -> vector<16x128xf32>
    %243 = vector.broadcast %240 : vector<1x128xf32> to vector<16x128xf32>
    %244 = arith.addf %242, %243 : vector<16x128xf32>
    %c0_66 = arith.constant 0 : index
    %c0_67 = arith.constant 0 : index
    %245 = vector.load %arg4[%c0_66, %c0_67] : memref<16x128xf32, #tpu.memory_space<vmem>>, vector<16x128xf32>
    tpu.vector_store %arg4[%c0_66, %c0_67], %244 {strides = array<i32>} : memref<16x128xf32, #tpu.memory_space<vmem>>, vector<16x128xf32>,
    %246 = vector.extract_strided_slice %244 {offsets = [0, 0], sizes = [16, 32], strides = [1, 1]} : vector<16x128xf32> to vector<16x32xf32>
    %247 = vector.extract_strided_slice %244 {offsets = [0, 32], sizes = [16, 32], strides = [1, 1]} : vector<16x128xf32> to vector<16x32xf32>
    %248 = vector.extract_strided_slice %244 {offsets = [0, 64], sizes = [16, 64], strides = [1, 1]} : vector<16x128xf32> to vector<16x64xf32>
    %cst_68 = arith.constant 0.000000e+00 : f32
    %249 = vector.broadcast %cst_68 : f32 to vector<16x64xf32>
    %250 = arith.subf %249, %248 : vector<16x64xf32>
    %251 = math.exp %250 : vector<16x64xf32>
    %cst_69 = arith.constant 1.200000e+00 : f32
    %252 = vector.broadcast %cst_69 : f32 to vector<16x64xf32>
    %253 = arith.mulf %252, %251 : vector<16x64xf32>
    %254 = vector.extract_strided_slice %253 {offsets = [0, 0], sizes = [16, 32], strides = [1, 1]} : vector<16x64xf32> to vector<16x32xf32>
    %255 = vector.extract_strided_slice %253 {offsets = [0, 32], sizes = [16, 32], strides = [1, 1]} : vector<16x64xf32> to vector<16x32xf32>
    %256 = arith.addf %254, %255 : vector<16x32xf32>
    %cst_70 = arith.constant 9.99999993E-9 : f32
    %257 = vector.broadcast %cst_70 : f32 to vector<16x32xf32>
    %258 = arith.addf %256, %257 : vector<16x32xf32>
    %259 = tpu.reciprocal %258 {approx = true} : vector<16x32xf32> -> vector<16x32xf32>
    %260 = arith.mulf %254, %259 : vector<16x32xf32>
    %261 = arith.mulf %255, %259 : vector<16x32xf32>
    %262 = arith.mulf %260, %246 : vector<16x32xf32>
    %263 = arith.mulf %261, %247 : vector<16x32xf32>
    %264 = arith.addf %262, %263 : vector<16x32xf32>
    %c640 = arith.constant 640 : index
    %c0_71 = arith.constant 0 : index
    %265 = vector.load %arg2[%c640, %c0_71] : memref<736x256xbf16, #tpu.memory_space<vmem>>, vector<32x64xbf16>
    %c27 = arith.constant 27 : index
    %c0_72 = arith.constant 0 : index
    %266 = vector.load %arg3[%c27, %c0_72] : memref<32x256xf32, #tpu.memory_space<vmem>>, vector<1x64xf32>
    %267 = arith.truncf %264 : vector<16x32xf32> to vector<16x32xbf16>
    %268 = vector.extract_strided_slice %265 {offsets = [0, 0], sizes = [32, 32], strides = [1, 1]} : vector<32x64xbf16> to vector<32x32xbf16>
    %cst_73 = arith.constant dense<0.000000e+00> : vector<16x32xf32>
    %269 = tpu.matmul %267, %268, %cst_73 {dimension_numbers = #tpu.dot_dimension_numbers<[1], [0], [0], [1], [0, 0, 1, 1], [], []>} : vector<16x32xbf16>, vector<32x32xbf16>, vector<16x32xf32> -> vector<16x32xf32>
    %270 = vector.extract_strided_slice %266 {offsets = [0, 0], sizes = [1, 32], strides = [1, 1]} : vector<1x64xf32> to vector<1x32xf32>
    %271 = vector.broadcast %270 : vector<1x32xf32> to vector<16x32xf32>
    %272 = arith.addf %269, %271 : vector<16x32xf32>
    %cst_74 = arith.constant 0.000000e+00 : f32
    %273 = vector.broadcast %cst_74 : f32 to vector<16x32xf32>
    %274 = arith.maximumf %272, %273 : vector<16x32xf32>
    %275 = arith.truncf %274 : vector<16x32xf32> to vector<16x32xbf16>
    %276 = vector.extract_strided_slice %265 {offsets = [0, 32], sizes = [32, 32], strides = [1, 1]} : vector<32x64xbf16> to vector<32x32xbf16>
    %cst_75 = arith.constant dense<0.000000e+00> : vector<16x32xf32>
    %277 = tpu.matmul %275, %276, %cst_75 {dimension_numbers = #tpu.dot_dimension_numbers<[1], [0], [0], [1], [0, 0, 1, 1], [], []>} : vector<16x32xbf16>, vector<32x32xbf16>, vector<16x32xf32> -> vector<16x32xf32>
    %278 = vector.extract_strided_slice %266 {offsets = [0, 32], sizes = [1, 32], strides = [1, 1]} : vector<1x64xf32> to vector<1x32xf32>
    %279 = vector.broadcast %278 : vector<1x32xf32> to vector<16x32xf32>
    %280 = arith.addf %277, %279 : vector<16x32xf32>
    %cst_76 = arith.constant 5.000000e-01 : f32
    %281 = vector.broadcast %cst_76 : f32 to vector<16x32xf32>
    %282 = arith.mulf %281, %280 : vector<16x32xf32>
    %283 = arith.subf %264, %282 : vector<16x32xf32>
    %c672 = arith.constant 672 : index
    %c0_77 = arith.constant 0 : index
    %284 = vector.load %arg2[%c672, %c0_77] : memref<736x256xbf16, #tpu.memory_space<vmem>>, vector<32x64xbf16>
    %c28 = arith.constant 28 : index
    %c0_78 = arith.constant 0 : index
    %285 = vector.load %arg3[%c28, %c0_78] : memref<32x256xf32, #tpu.memory_space<vmem>>, vector<1x64xf32>
    %286 = arith.truncf %283 : vector<16x32xf32> to vector<16x32xbf16>
    %287 = vector.extract_strided_slice %284 {offsets = [0, 0], sizes = [32, 32], strides = [1, 1]} : vector<32x64xbf16> to vector<32x32xbf16>
    %cst_79 = arith.constant dense<0.000000e+00> : vector<16x32xf32>
    %288 = tpu.matmul %286, %287, %cst_79 {dimension_numbers = #tpu.dot_dimension_numbers<[1], [0], [0], [1], [0, 0, 1, 1], [], []>} : vector<16x32xbf16>, vector<32x32xbf16>, vector<16x32xf32> -> vector<16x32xf32>
    %289 = vector.extract_strided_slice %285 {offsets = [0, 0], sizes = [1, 32], strides = [1, 1]} : vector<1x64xf32> to vector<1x32xf32>
    %290 = vector.broadcast %289 : vector<1x32xf32> to vector<16x32xf32>
    %291 = arith.addf %288, %290 : vector<16x32xf32>
    %cst_80 = arith.constant 0.000000e+00 : f32
    %292 = vector.broadcast %cst_80 : f32 to vector<16x32xf32>
    %293 = arith.maximumf %291, %292 : vector<16x32xf32>
    %294 = arith.truncf %293 : vector<16x32xf32> to vector<16x32xbf16>
    %295 = vector.extract_strided_slice %284 {offsets = [0, 32], sizes = [32, 32], strides = [1, 1]} : vector<32x64xbf16> to vector<32x32xbf16>
    %cst_81 = arith.constant dense<0.000000e+00> : vector<16x32xf32>
    %296 = tpu.matmul %294, %295, %cst_81 {dimension_numbers = #tpu.dot_dimension_numbers<[1], [0], [0], [1], [0, 0, 1, 1], [], []>} : vector<16x32xbf16>, vector<32x32xbf16>, vector<16x32xf32> -> vector<16x32xf32>
    %297 = vector.extract_strided_slice %285 {offsets = [0, 32], sizes = [1, 32], strides = [1, 1]} : vector<1x64xf32> to vector<1x32xf32>
    %298 = vector.broadcast %297 : vector<1x32xf32> to vector<16x32xf32>
    %299 = arith.addf %296, %298 : vector<16x32xf32>
    %cst_82 = arith.constant 5.000000e-01 : f32
    %300 = vector.broadcast %cst_82 : f32 to vector<16x32xf32>
    %301 = arith.mulf %300, %299 : vector<16x32xf32>
    %302 = arith.subf %283, %301 : vector<16x32xf32>
    %c704 = arith.constant 704 : index
    %c0_83 = arith.constant 0 : index
    %303 = vector.load %arg2[%c704, %c0_83] : memref<736x256xbf16, #tpu.memory_space<vmem>>, vector<32x64xbf16>
    %c29 = arith.constant 29 : index
    %c0_84 = arith.constant 0 : index
    %304 = vector.load %arg3[%c29, %c0_84] : memref<32x256xf32, #tpu.memory_space<vmem>>, vector<1x64xf32>
    %305 = arith.truncf %302 : vector<16x32xf32> to vector<16x32xbf16>
    %306 = vector.extract_strided_slice %303 {offsets = [0, 0], sizes = [32, 32], strides = [1, 1]} : vector<32x64xbf16> to vector<32x32xbf16>
    %cst_85 = arith.constant dense<0.000000e+00> : vector<16x32xf32>
    %307 = tpu.matmul %305, %306, %cst_85 {dimension_numbers = #tpu.dot_dimension_numbers<[1], [0], [0], [1], [0, 0, 1, 1], [], []>} : vector<16x32xbf16>, vector<32x32xbf16>, vector<16x32xf32> -> vector<16x32xf32>
    %308 = vector.extract_strided_slice %304 {offsets = [0, 0], sizes = [1, 32], strides = [1, 1]} : vector<1x64xf32> to vector<1x32xf32>
    %309 = vector.broadcast %308 : vector<1x32xf32> to vector<16x32xf32>
    %310 = arith.addf %307, %309 : vector<16x32xf32>
    %cst_86 = arith.constant 0.000000e+00 : f32
    %311 = vector.broadcast %cst_86 : f32 to vector<16x32xf32>
    %312 = arith.maximumf %310, %311 : vector<16x32xf32>
    %313 = arith.truncf %312 : vector<16x32xf32> to vector<16x32xbf16>
    %314 = vector.extract_strided_slice %303 {offsets = [0, 32], sizes = [32, 32], strides = [1, 1]} : vector<32x64xbf16> to vector<32x32xbf16>
    %cst_87 = arith.constant dense<0.000000e+00> : vector<16x32xf32>
    %315 = tpu.matmul %313, %314, %cst_87 {dimension_numbers = #tpu.dot_dimension_numbers<[1], [0], [0], [1], [0, 0, 1, 1], [], []>} : vector<16x32xbf16>, vector<32x32xbf16>, vector<16x32xf32> -> vector<16x32xf32>
    %316 = vector.extract_strided_slice %304 {offsets = [0, 32], sizes = [1, 32], strides = [1, 1]} : vector<1x64xf32> to vector<1x32xf32>
    %317 = vector.broadcast %316 : vector<1x32xf32> to vector<16x32xf32>
    %318 = arith.addf %315, %317 : vector<16x32xf32>
    %cst_88 = arith.constant 5.000000e-01 : f32
    %319 = vector.broadcast %cst_88 : f32 to vector<16x32xf32>
    %320 = arith.mulf %319, %318 : vector<16x32xf32>
    %321 = arith.subf %302, %320 : vector<16x32xf32>
    %c30 = arith.constant 30 : index
    %c0_89 = arith.constant 0 : index
    %322 = vector.load %arg3[%c30, %c0_89] : memref<32x256xf32, #tpu.memory_space<vmem>>, vector<1x32xf32>
    %c30_90 = arith.constant 30 : index
    %c32 = arith.constant 32 : index
    %323 = vector.load %arg3[%c30_90, %c32] : memref<32x256xf32, #tpu.memory_space<vmem>>, vector<1x1xf32>
    %c31 = arith.constant 31 : index
    %c0_91 = arith.constant 0 : index
    %324 = vector.load %arg3[%c31, %c0_91] : memref<32x256xf32, #tpu.memory_space<vmem>>, vector<1x32xf32>
    %325 = vector.broadcast %322 : vector<1x32xf32> to vector<16x32xf32>
    %326 = arith.mulf %321, %325 : vector<16x32xf32>
    %cst_92 = arith.constant dense<0.000000e+00> : vector<16xf32>
    %327 = vector.multi_reduction <add>, %326, %cst_92 [1] : vector<16x32xf32> to vector<16xf32>
    %328 = vector.shape_cast %327 : vector<16xf32> to vector<16x1xf32>
    %329 = vector.broadcast %323 : vector<1x1xf32> to vector<16x1xf32>
    %330 = arith.addf %328, %329 : vector<16x1xf32>
    %331 = vector.broadcast %330 : vector<16x1xf32> to vector<16x32xf32>
    %332 = vector.broadcast %324 : vector<1x32xf32> to vector<16x32xf32>
    %333 = arith.mulf %331, %332 : vector<16x32xf32>
    %334 = tpu.concatenate %321, %260, %261, %333 in 1 : vector<16x32xf32>, vector<16x32xf32>, vector<16x32xf32>, vector<16x32xf32> -> vector<16x128xf32>
    %c0_93 = arith.constant 0 : index
    %c0_94 = arith.constant 0 : index
    %335 = vector.load %arg5[%c0_93, %c0_94] : memref<16x128xf32, #tpu.memory_space<vmem>>, vector<16x128xf32>
    tpu.vector_store %arg5[%c0_93, %c0_94], %334 {strides = array<i32>} : memref<16x128xf32, #tpu.memory_space<vmem>>, vector<16x128xf32>,
    return
  }
  func.func @transform_0(%arg0: i32) -> (i32, i32) {
    %c0_i32 = arith.constant 0 : i32
    %c0_i32_0 = arith.constant 0 : i32
    return %arg0, %c0_i32 : i32, i32
  }
  func.func @transform_1(%arg0: i32) -> (i32, i32) {
    %c0_i32 = arith.constant 0 : i32
    %c0_i32_0 = arith.constant 0 : i32
    %c0_i32_1 = arith.constant 0 : i32
    return %c0_i32, %c0_i32_0 : i32, i32
  }
  func.func @transform_2(%arg0: i32) -> (i32, i32) {
    %c0_i32 = arith.constant 0 : i32
    %c0_i32_0 = arith.constant 0 : i32
    %c0_i32_1 = arith.constant 0 : i32
    return %c0_i32, %c0_i32_0 : i32, i32
  }
  func.func @transform_3(%arg0: i32) -> (i32, i32) {
    %c0_i32 = arith.constant 0 : i32
    %c0_i32_0 = arith.constant 0 : i32
    return %arg0, %c0_i32 : i32, i32
  }
  func.func @transform_4(%arg0: i32) -> (i32, i32) {
    %c0_i32 = arith.constant 0 : i32
    %c0_i32_0 = arith.constant 0 : i32
    return %arg0, %c0_i32 : i32, i32
  }
}

</mosaic_0001>

<llo_original>
// kernel: tpu_custom_call.1
$region0: #{tpu_custom_call.1}
  #allocation0 [shape = 'u32[]', space=smem, size = 0x4, offset = 0x4, fixed_abs, tag = 'smem constant byte address 0x4 - core index']
  #allocation1 [shape = 'u32[144,128]{1,0:T(1,128)}', space=vmem, size = 0x12000, scoped, tag = 'internal scratch']
  %s0 = inlined_call_operand.hbm [shape: f32[16,64], index: 0, kind: input, shape index: {}]
  %s1 = inlined_call_operand.hbm [shape: bf16[736,256], index: 1, kind: input, shape index: {}]
  %s2 = inlined_call_operand.hbm [shape: f32[32,256], index: 2, kind: input, shape index: {}]
  %s3 = inlined_call_operand.hbm [shape: f32[16,128], index: 3, kind: output, shape index: {0}]
  %s4 = inlined_call_operand.hbm [shape: f32[16,128], index: 4, kind: output, shape index: {1}]
  %5 = xla_tuple %s3, %s4
  %s6 = sld [smem:[#allocation0]]
  $region42: #{tpu_custom_call.1} parent=0
    _
  %s8 = ssub.s32 1, %s6
  %s9 = scalar_select 0, %s8, %s6
  $region1: #{tpu_custom_call.1} parent=0
    #allocation2 [shape = 'u8[8192]{0}', space=vmem, size = 0x2000, scoped, tag = 'input window, operand 0, single buffered']
    #allocation3 [shape = 's32[1]{0}', space=sflag, size = 0x4, scoped, tag = 'scoped memory for tpu_custom_call.1']
    #allocation4 [shape = 's32[1]{0}', space=sflag, size = 0x4, scoped, tag = 'scoped memory for tpu_custom_call.1']
    #allocation5 [shape = 'u8[376832]{0}', space=vmem, size = 0x5c000, scoped, tag = 'input window, operand 1, single buffered']
    #allocation6 [shape = 's32[1]{0}', space=sflag, size = 0x4, scoped, tag = 'scoped memory for tpu_custom_call.1']
    #allocation7 [shape = 'u8[32768]{0}', space=vmem, size = 0x8000, scoped, tag = 'input window, operand 2, single buffered']
    #allocation8 [shape = 'u8[8192]{0}', space=vmem, size = 0x2000, scoped, tag = 'output window, operand 0, single buffered']
    #allocation9 [shape = 'u8[8192]{0}', space=vmem, size = 0x2000, scoped, tag = 'output window, operand 1, single buffered']
    #allocation10 [shape = 's32[1]{0}', space=sflag, size = 0x4, scoped, tag = 'scoped memory for tpu_custom_call.1']
    %10 = vsyncpa [#allocation3], 0
    %11 = vsyncpa [#allocation6], 0
    %12 = vsyncpa [#allocation4], 0
    %13 = vsyncpa [#allocation10], 0
    // Predicated region
    $region2: #{tpu_custom_call.1} parent=1 // pred_check
      _
    $region3: #{tpu_custom_call.1} parent=1 // pred_check_branch
      %15 = sbr.rel (0) target = $region5
    $region4: #{tpu_custom_call.1} parent=1 // pred_region
      %s17 = ssub.s32 256, 256
      %18 = vsyncadd [#allocation3], %s17
      %s19 = sshll.u32 [#allocation2], 4
      %s20 = int_to_ptr.vmem [resolvable:$true] %s19
      %25 = dma.hbm_to_vmem [thread:$0]  %s0, 256, %s20, [#allocation3], 128, 128, 8
    $region5: #{tpu_custom_call.1} parent=1 // pred_fallthru
      _
    // Predicated region
    $region6: #{tpu_custom_call.1} parent=1 // pred_check
      _
    $region7: #{tpu_custom_call.1} parent=1 // pred_check_branch
      %27 = sbr.rel (0) target = $region9
    $region8: #{tpu_custom_call.1} parent=1 // pred_region
      %s29 = ssub.s32 11776, 11776
      %30 = vsyncadd [#allocation6], %s29
      %s31 = sshll.u32 [#allocation5], 4
      %s32 = int_to_ptr.vmem [resolvable:$true] %s31
      %37 = dma.hbm_to_vmem [thread:$0]  %s1, 11776, %s32, [#allocation6], 128, 128, 8
    $region9: #{tpu_custom_call.1} parent=1 // pred_fallthru
      _
    // Predicated region
    $region10: #{tpu_custom_call.1} parent=1 // pred_check
      _
    $region11: #{tpu_custom_call.1} parent=1 // pred_check_branch
      %39 = sbr.rel (0) target = $region13
    $region12: #{tpu_custom_call.1} parent=1 // pred_region
      %s41 = ssub.s32 1024, 1024
      %42 = vsyncadd [#allocation6], %s41
      %s43 = sshll.u32 [#allocation7], 4
      %s44 = int_to_ptr.vmem [resolvable:$true] %s43
      %49 = dma.hbm_to_vmem [thread:$0]  %s2, 1024, %s44, [#allocation6], 256, 256, 16
    $region13: #{tpu_custom_call.1} parent=1 // pred_fallthru
      _
    // Predicated region
    $region14: #{tpu_custom_call.1} parent=1 // pred_check
      _
    $region15: #{tpu_custom_call.1} parent=1 // pred_check_branch
      %51 = sbr.rel (0) target = $region17
    $region16: #{tpu_custom_call.1} parent=1 // pred_region
      %52 = dma.done [#allocation3], 256
    $region17: #{tpu_custom_call.1} parent=1 // pred_fallthru
      _
    // Predicated region
    $region18: #{tpu_custom_call.1} parent=1 // pred_check
      _
    $region19: #{tpu_custom_call.1} parent=1 // pred_check_branch
      %54 = sbr.rel (0) target = $region21
    $region20: #{tpu_custom_call.1} parent=1 // pred_region
      %55 = dma.done [#allocation6], 11776
    $region21: #{tpu_custom_call.1} parent=1 // pred_fallthru
      _
    // Predicated region
    $region22: #{tpu_custom_call.1} parent=1 // pred_check
      _
    $region23: #{tpu_custom_call.1} parent=1 // pred_check_branch
      %57 = sbr.rel (0) target = $region25
    $region24: #{tpu_custom_call.1} parent=1 // pred_region
      %58 = dma.done [#allocation6], 1024
    $region25: #{tpu_custom_call.1} parent=1 // pred_fallthru
      _
    %v60 = vld [vmem:[#allocation5] sm:$0xff]
    %v61 = vld [vmem:[#allocation5 + $0x8] sm:$0xff]
    %v62 = vld [vmem:[#allocation5 + $0x10] sm:$0xff]
    %v63 = vld [vmem:[#allocation5 + $0x18] sm:$0xff]
    %v64 = vld [vmem:[#allocation5 + $0x20] sm:$0xff]
    %v65 = vld [vmem:[#allocation5 + $0x28] sm:$0xff]
    %v66 = vld [vmem:[#allocation5 + $0x30] sm:$0xff]
    %v67 = vld [vmem:[#allocation5 + $0x38] sm:$0xff]
    %v68 = vld [vmem:[#allocation5 + $0x40] sm:$0xf]
    %v69 = vld [vmem:[#allocation5 + $0x48] sm:$0xf]
    %v70 = vld [vmem:[#allocation5 + $0x50] sm:$0xf]
    %v71 = vld [vmem:[#allocation5 + $0x58] sm:$0xf]
    %v72 = vld [vmem:[#allocation5 + $0x60] sm:$0xf]
    %v73 = vld [vmem:[#allocation5 + $0x68] sm:$0xf]
    %v74 = vld [vmem:[#allocation5 + $0x70] sm:$0xf]
    %v75 = vld [vmem:[#allocation5 + $0x78] sm:$0xf]
    %v76 = vld [vmem:[#allocation5 + $0x80] sm:$0xf]
    %v77 = vld [vmem:[#allocation5 + $0x88] sm:$0xf]
    %v78 = vld [vmem:[#allocation5 + $0x90] sm:$0xf]
    %v79 = vld [vmem:[#allocation5 + $0x98] sm:$0xf]
    %v80 = vld [vmem:[#allocation5 + $0xa0] sm:$0xf]
    %v81 = vld [vmem:[#allocation5 + $0xa8] sm:$0xf]
    %v82 = vld [vmem:[#allocation5 + $0xb0] sm:$0xf]
    %v83 = vld [vmem:[#allocation5 + $0xb8] sm:$0xf]
    %v84 = vld [vmem:[#allocation5 + $0xc0] sm:$0xf]
    %v85 = vld [vmem:[#allocation5 + $0xc8] sm:$0xf]
    %v86 = vld [vmem:[#allocation5 + $0xd0] sm:$0xf]
    %v87 = vld [vmem:[#allocation5 + $0xd8] sm:$0xf]
    %v88 = vld [vmem:[#allocation5 + $0xe0] sm:$0xf]
    %v89 = vld [vmem:[#allocation5 + $0xe8] sm:$0xf]
    %v90 = vld [vmem:[#allocation5 + $0xf0] sm:$0xf]
    %v91 = vld [vmem:[#allocation5 + $0xf8] sm:$0xf]
    %v92 = vld [vmem:[#allocation5 + $0x100] sm:$0xf]
    %v93 = vld [vmem:[#allocation5 + $0x108] sm:$0xf]
    %v94 = vld [vmem:[#allocation5 + $0x110] sm:$0xf]
    %v95 = vld [vmem:[#allocation5 + $0x118] sm:$0xf]
    %v96 = vld [vmem:[#allocation5 + $0x120] sm:$0xf]
    %v97 = vld [vmem:[#allocation5 + $0x128] sm:$0xf]
    %v98 = vld [vmem:[#allocation5 + $0x130] sm:$0xf]
    %v99 = vld [vmem:[#allocation5 + $0x138] sm:$0xf]
    %v100 = vld [vmem:[#allocation7] sm:$0xff]
    %v101 = vld [vmem:[#allocation7 + $0x8] sm:$0xff]
    %v102 = vld [vmem:[#allocation7 + $0x10] sm:$0xff]
    %v103 = vld [vmem:[#allocation7 + $0x18] sm:$0xff]
    %v104 = vld [vmem:[#allocation2] sm:$0xff]
    %v105 = vld [vmem:[#allocation2 + $0x8] sm:$0xff]
    %v106 = vld [vmem:[#allocation5 + $0x140] sm:$0xff]
    %v107 = vld [vmem:[#allocation5 + $0x148] sm:$0xff]
    %v108 = vld [vmem:[#allocation5 + $0x150] sm:$0xff]
    %v109 = vld [vmem:[#allocation5 + $0x158] sm:$0xff]
    %v110 = vld [vmem:[#allocation5 + $0x160] sm:$0xff]
    %v111 = vld [vmem:[#allocation5 + $0x168] sm:$0xff]
    %v112 = vld [vmem:[#allocation5 + $0x170] sm:$0xff]
    %v113 = vld [vmem:[#allocation5 + $0x178] sm:$0xff]
    %s114 = scalar_lea.vmem [#allocation7], 32
    %v115 = vld [vmem:[%s114] ss:$8 sm:$0x3]
    %v116 = vpack.c.bf16 %v105, %v104
    %v118 = vlaneseq
    %v119 = vshrl.u32 %v118, 7
    %v120 = vsub.s32 0, %v119
    %v121 = vrot.slane %v115, %v120
    %v122 = vlaneseq
    %v123 = vshrl.u32 %v122, 7
    %v124 = vsub.s32 1, %v123
    %v125 = vrot.slane %v115, %v124
    %v136 = vunpack.c.l.b16 %v106
    %v137 = vunpack.c.h.b16 %v106
    %v138 = vunpack.c.l.b16 %v107
    %v139 = vunpack.c.h.b16 %v107
    %v140 = vunpack.c.l.b16 %v108
    %v141 = vunpack.c.h.b16 %v108
    %v142 = vunpack.c.l.b16 %v109
    %v143 = vunpack.c.h.b16 %v109
    %v144 = vunpack.c.l.b16 %v110
    %v145 = vunpack.c.h.b16 %v110
    %v146 = vunpack.c.l.b16 %v111
    %v147 = vunpack.c.h.b16 %v111
    %v148 = vunpack.c.l.b16 %v112
    %v149 = vunpack.c.h.b16 %v112
    %v150 = vunpack.c.l.b16 %v113
    %v151 = vunpack.c.h.b16 %v113
    %v152 = vpack.c.b16 %v138, %v136
    %v153 = vpack.c.b16 %v139, %v137
    %v154 = vpack.c.b16 %v142, %v140
    %v155 = vpack.c.b16 %v143, %v141
    %v156 = vpack.c.b16 %v146, %v144
    %v157 = vpack.c.b16 %v147, %v145
    %v158 = vpack.c.b16 %v150, %v148
    %v159 = vpack.c.b16 %v151, %v149
    %vm168 = vcmask 523264
    %v170 = vsel %vm168, %v116, 0
    %172 = vmatprep.subr.bf16.mxu0 %v153
    %173 = vmatpush1.bf16.msra.mxu0 %v152
    %174 = vmatprep.subr.bf16.mxu0 %v155
    %175 = vmatpush1.bf16.msra.mxu0 %v154
    %176 = vmatprep.subr.bf16.mxu0 %v157
    %177 = vmatpush1.bf16.msra.mxu0 %v156
    %178 = vmatprep.subr.bf16.mxu0 %v159
    %179 = vmatpush1.bf16.msra.mxu0 %v158
    %180 = vmatprep.subr.bf16.mxu0 0
    %181 = vmatpush1.bf16.msra.mxu0 0
    %182 = vmatprep.subr.bf16.mxu0 0
    %183 = vmatpush1.bf16.msra.mxu0 0
    %184 = vmatprep.subr.bf16.mxu0 0
    %185 = vmatpush1.bf16.msra.mxu0 0
    %186 = vmatprep.subr.bf16.mxu0 0
    %187 = vmatpush1.bf16.msra.mxu0 0
    %188 = vmatprep.subr.bf16.mxu0 0
    %189 = vmatpush1.bf16.msra.mxu0 0
    %190 = vmatprep.subr.bf16.mxu0 0
    %191 = vmatpush1.bf16.msra.mxu0 0
    %192 = vmatprep.subr.bf16.mxu0 0
    %193 = vmatpush1.bf16.msra.mxu0 0
    %194 = vmatprep.subr.bf16.mxu0 0
    %195 = vmatpush1.bf16.msra.mxu0 0
    %196 = vmatprep.subr.bf16.mxu0 0
    %197 = vmatpush1.bf16.msra.mxu0 0
    %198 = vmatprep.subr.bf16.mxu0 0
    %199 = vmatpush1.bf16.msra.mxu0 0
    %200 = vmatprep.subr.bf16.mxu0 0
    %201 = vmatpush1.bf16.msra.mxu0 0
    %202 = vmatprep.subr.bf16.mxu0 0
    %203 = vmatpush1.bf16.msra.mxu0 0
    %204 = vmatprep.mubr.bf16.mxu0 0
    %205 = vmatmul.mubr.bf16.gmra.mrb[0].mxu0 %v170
    %v206 = vpop.f32.mrb[0].mxu0
    %v207 = vadd.f32 %v121, %v206
    %v208 = vpop.f32.mrb[0].mxu0
    %v209 = vadd.f32 %v125, %v208
    %v210 = vpop.f32.mrb[0].mxu0
    %v211 = vadd.f32 %v121, %v210
    %v212 = vpop.f32.mrb[0].mxu0
    %v213 = vadd.f32 %v125, %v212
    %214 = vdwg.mxu0
    %217 = vrot.lane.b32.xlu0 %v207, 64
    %v218 = vpop.permute.xlu0 %217
    %219 = vrot.lane.b32.xlu0 %v211, 64
    %v220 = vpop.permute.xlu0 %219
    %223 = vxpose.xlu0.b32.start [1/16] %v218, 128
    %224 = vxpose.xlu0.b32.cont [2/16] %v220, 128
    %225 = vxpose.xlu0.b32.cont [3/16] 0.0, 128
    %226 = vxpose.xlu0.b32.cont [4/16] 0.0, 128
    %227 = vxpose.xlu0.b32.cont [5/16] 0.0, 128
    %228 = vxpose.xlu0.b32.cont [6/16] 0.0, 128
    %229 = vxpose.xlu0.b32.cont [7/16] 0.0, 128
    %230 = vxpose.xlu0.b32.cont [8/16] 0.0, 128
    %231 = vxpose.xlu0.b32.cont [9/16] 0.0, 128
    %232 = vxpose.xlu0.b32.cont [10/16] 0.0, 128
    %233 = vxpose.xlu0.b32.cont [11/16] 0.0, 128
    %234 = vxpose.xlu0.b32.cont [12/16] 0.0, 128
    %235 = vxpose.xlu0.b32.cont [13/16] 0.0, 128
    %236 = vxpose.xlu0.b32.cont [14/16] 0.0, 128
    %237 = vxpose.xlu0.b32.cont [15/16] 0.0, 128
    %238 = vxpose.xlu0.b32.end [16/16] 0.0, 128
    %v239 = vpop.trf.xlu0
    %v240 = vpop.trf.xlu0
    %v241 = vpop.trf.xlu0
    %v242 = vpop.trf.xlu0
    %v243 = vpop.trf.xlu0
    %v244 = vpop.trf.xlu0
    %v245 = vpop.trf.xlu0
    %v246 = vpop.trf.xlu0
    %v247 = vpop.trf.xlu0
    %v248 = vpop.trf.xlu0
    %v249 = vpop.trf.xlu0
    %v250 = vpop.trf.xlu0
    %v251 = vpop.trf.xlu0
    %v252 = vpop.trf.xlu0
    %v253 = vpop.trf.xlu0
    %v254 = vpop.trf.xlu0
    %263 = vrot.lane.b32.xlu0 %v239, 16
    %v264 = vpop.permute.xlu0 %263
    %265 = vrot.lane.b32.xlu0 %v240, 16
    %v266 = vpop.permute.xlu0 %265
    %267 = vrot.lane.b32.xlu0 %v241, 16
    %v268 = vpop.permute.xlu0 %267
    %269 = vrot.lane.b32.xlu0 %v242, 16
    %v270 = vpop.permute.xlu0 %269
    %271 = vrot.lane.b32.xlu0 %v243, 16
    %v272 = vpop.permute.xlu0 %271
    %273 = vrot.lane.b32.xlu0 %v244, 16
    %v274 = vpop.permute.xlu0 %273
    %275 = vrot.lane.b32.xlu0 %v245, 16
    %v276 = vpop.permute.xlu0 %275
    %277 = vrot.lane.b32.xlu0 %v246, 16
    %v278 = vpop.permute.xlu0 %277
    %287 = vrot.lane.b32.xlu0 %v239, 32
    %v288 = vpop.permute.xlu0 %287
    %289 = vrot.lane.b32.xlu0 %v240, 32
    %v290 = vpop.permute.xlu0 %289
    %291 = vrot.lane.b32.xlu0 %v241, 32
    %v292 = vpop.permute.xlu0 %291
    %293 = vrot.lane.b32.xlu0 %v242, 32
    %v294 = vpop.permute.xlu0 %293
    %295 = vrot.lane.b32.xlu0 %v243, 32
    %v296 = vpop.permute.xlu0 %295
    %297 = vrot.lane.b32.xlu0 %v244, 32
    %v298 = vpop.permute.xlu0 %297
    %299 = vrot.lane.b32.xlu0 %v245, 32
    %v300 = vpop.permute.xlu0 %299
    %301 = vrot.lane.b32.xlu0 %v246, 32
    %v302 = vpop.permute.xlu0 %301
    %311 = vrot.lane.b32.xlu0 %v239, 48
    %v312 = vpop.permute.xlu0 %311
    %313 = vrot.lane.b32.xlu0 %v240, 48
    %v314 = vpop.permute.xlu0 %313
    %315 = vrot.lane.b32.xlu0 %v241, 48
    %v316 = vpop.permute.xlu0 %315
    %317 = vrot.lane.b32.xlu0 %v242, 48
    %v318 = vpop.permute.xlu0 %317
    %319 = vrot.lane.b32.xlu0 %v243, 48
    %v320 = vpop.permute.xlu0 %319
    %321 = vrot.lane.b32.xlu0 %v244, 48
    %v322 = vpop.permute.xlu0 %321
    %323 = vrot.lane.b32.xlu0 %v245, 48
    %v324 = vpop.permute.xlu0 %323
    %325 = vrot.lane.b32.xlu0 %v246, 48
    %v326 = vpop.permute.xlu0 %325
    %335 = vrot.lane.b32.xlu0 %v239, 64
    %v336 = vpop.permute.xlu0 %335
    %337 = vrot.lane.b32.xlu0 %v240, 64
    %v338 = vpop.permute.xlu0 %337
    %339 = vrot.lane.b32.xlu0 %v241, 64
    %v340 = vpop.permute.xlu0 %339
    %341 = vrot.lane.b32.xlu0 %v242, 64
    %v342 = vpop.permute.xlu0 %341
    %343 = vrot.lane.b32.xlu0 %v243, 64
    %v344 = vpop.permute.xlu0 %343
    %345 = vrot.lane.b32.xlu0 %v244, 64
    %v346 = vpop.permute.xlu0 %345
    %347 = vrot.lane.b32.xlu0 %v245, 64
    %v348 = vpop.permute.xlu0 %347
    %349 = vrot.lane.b32.xlu0 %v246, 64
    %v350 = vpop.permute.xlu0 %349
    %359 = vrot.lane.b32.xlu0 %v239, 80
    %v360 = vpop.permute.xlu0 %359
    %361 = vrot.lane.b32.xlu0 %v240, 80
    %v362 = vpop.permute.xlu0 %361
    %363 = vrot.lane.b32.xlu0 %v241, 80
    %v364 = vpop.permute.xlu0 %363
    %365 = vrot.lane.b32.xlu0 %v242, 80
    %v366 = vpop.permute.xlu0 %365
    %367 = vrot.lane.b32.xlu0 %v243, 80
    %v368 = vpop.permute.xlu0 %367
    %369 = vrot.lane.b32.xlu0 %v244, 80
    %v370 = vpop.permute.xlu0 %369
    %371 = vrot.lane.b32.xlu0 %v245, 80
    %v372 = vpop.permute.xlu0 %371
    %373 = vrot.lane.b32.xlu0 %v246, 80
    %v374 = vpop.permute.xlu0 %373
    %383 = vrot.lane.b32.xlu0 %v239, 96
    %v384 = vpop.permute.xlu0 %383
    %385 = vrot.lane.b32.xlu0 %v240, 96
    %v386 = vpop.permute.xlu0 %385
    %387 = vrot.lane.b32.xlu0 %v241, 96
    %v388 = vpop.permute.xlu0 %387
    %389 = vrot.lane.b32.xlu0 %v242, 96
    %v390 = vpop.permute.xlu0 %389
    %391 = vrot.lane.b32.xlu0 %v243, 96
    %v392 = vpop.permute.xlu0 %391
    %393 = vrot.lane.b32.xlu0 %v244, 96
    %v394 = vpop.permute.xlu0 %393
    %395 = vrot.lane.b32.xlu0 %v245, 96
    %v396 = vpop.permute.xlu0 %395
    %397 = vrot.lane.b32.xlu0 %v246, 96
    %v398 = vpop.permute.xlu0 %397
    %407 = vrot.lane.b32.xlu0 %v239, 112
    %v408 = vpop.permute.xlu0 %407
    %409 = vrot.lane.b32.xlu0 %v240, 112
    %v410 = vpop.permute.xlu0 %409
    %411 = vrot.lane.b32.xlu0 %v241, 112
    %v412 = vpop.permute.xlu0 %411
    %413 = vrot.lane.b32.xlu0 %v242, 112
    %v414 = vpop.permute.xlu0 %413
    %415 = vrot.lane.b32.xlu0 %v243, 112
    %v416 = vpop.permute.xlu0 %415
    %417 = vrot.lane.b32.xlu0 %v244, 112
    %v418 = vpop.permute.xlu0 %417
    %419 = vrot.lane.b32.xlu0 %v245, 112
    %v420 = vpop.permute.xlu0 %419
    %421 = vrot.lane.b32.xlu0 %v246, 112
    %v422 = vpop.permute.xlu0 %421
    %vm431 = vcmask 130048
    %v432 = vsel %vm431, %v239, %v264
    %v433 = vsel %vm431, %v240, %v266
    %v434 = vsel %vm431, %v241, %v268
    %v435 = vsel %vm431, %v242, %v270
    %v436 = vsel %vm431, %v243, %v272
    %v437 = vsel %vm431, %v244, %v274
    %v438 = vsel %vm431, %v245, %v276
    %v439 = vsel %vm431, %v246, %v278
    %vm440 = vcmask 261120
    %v441 = vsel %vm440, %v432, %v288
    %v442 = vsel %vm440, %v433, %v290
    %v443 = vsel %vm440, %v434, %v292
    %v444 = vsel %vm440, %v435, %v294
    %v445 = vsel %vm440, %v436, %v296
    %v446 = vsel %vm440, %v437, %v298
    %v447 = vsel %vm440, %v438, %v300
    %v448 = vsel %vm440, %v439, %v302
    %vm449 = vcmask 392192
    %v450 = vsel %vm449, %v441, %v312
    %v451 = vsel %vm449, %v442, %v314
    %v452 = vsel %vm449, %v443, %v316
    %v453 = vsel %vm449, %v444, %v318
    %v454 = vsel %vm449, %v445, %v320
    %v455 = vsel %vm449, %v446, %v322
    %v456 = vsel %vm449, %v447, %v324
    %v457 = vsel %vm449, %v448, %v326
    %v458 = vsel %vm168, %v450, %v336
    %v459 = vsel %vm168, %v451, %v338
    %v460 = vsel %vm168, %v452, %v340
    %v461 = vsel %vm168, %v453, %v342
    %v462 = vsel %vm168, %v454, %v344
    %v463 = vsel %vm168, %v455, %v346
    %v464 = vsel %vm168, %v456, %v348
    %v465 = vsel %vm168, %v457, %v350
    %vm466 = vcmask 654336
    %v467 = vsel %vm466, %v458, %v360
    %v468 = vsel %vm466, %v459, %v362
    %v469 = vsel %vm466, %v460, %v364
    %v470 = vsel %vm466, %v461, %v366
    %v471 = vsel %vm466, %v462, %v368
    %v472 = vsel %vm466, %v463, %v370
    %v473 = vsel %vm466, %v464, %v372
    %v474 = vsel %vm466, %v465, %v374
    %vm475 = vcmask 785408
    %v476 = vsel %vm475, %v467, %v384
    %v477 = vsel %vm475, %v468, %v386
    %v478 = vsel %vm475, %v469, %v388
    %v479 = vsel %vm475, %v470, %v390
    %v480 = vsel %vm475, %v471, %v392
    %v481 = vsel %vm475, %v472, %v394
    %v482 = vsel %vm475, %v473, %v396
    %v483 = vsel %vm475, %v474, %v398
    %vm484 = vcmask 916480
    %v485 = vsel %vm484, %v476, %v408
    %v486 = vsel %vm484, %v477, %v410
    %v487 = vsel %vm484, %v478, %v412
    %v488 = vsel %vm484, %v479, %v414
    %v489 = vsel %vm484, %v480, %v416
    %v490 = vsel %vm484, %v481, %v418
    %v491 = vsel %vm484, %v482, %v420
    %v492 = vsel %vm484, %v483, %v422
    %v493 = vpack.c.bf16 %v486, %v485
    %v494 = vpack.c.bf16 %v488, %v487
    %v495 = vpack.c.bf16 %v490, %v489
    %v496 = vpack.c.bf16 %v492, %v491
    %v505 = vunpack.c.l.b16 %v60
    %v506 = vunpack.c.h.b16 %v60
    %v507 = vunpack.c.l.b16 %v61
    %v508 = vunpack.c.h.b16 %v61
    %v509 = vunpack.c.l.b16 %v62
    %v510 = vunpack.c.h.b16 %v62
    %v511 = vunpack.c.l.b16 %v63
    %v512 = vunpack.c.h.b16 %v63
    %v513 = vunpack.c.l.b16 %v64
    %v514 = vunpack.c.h.b16 %v64
    %v515 = vunpack.c.l.b16 %v65
    %v516 = vunpack.c.h.b16 %v65
    %v517 = vunpack.c.l.b16 %v66
    %v518 = vunpack.c.h.b16 %v66
    %v519 = vunpack.c.l.b16 %v67
    %v520 = vunpack.c.h.b16 %v67
    %v521 = vpack.c.b16 %v507, %v505
    %v522 = vpack.c.b16 %v508, %v506
    %v523 = vpack.c.b16 %v511, %v509
    %v524 = vpack.c.b16 %v512, %v510
    %v525 = vpack.c.b16 %v515, %v513
    %v526 = vpack.c.b16 %v516, %v514
    %v527 = vpack.c.b16 %v519, %v517
    %v528 = vpack.c.b16 %v520, %v518
    %v537 = vmul.bf16 %v493, %v521
    %v538 = vmul.bf16 %v493, %v522
    %v539 = vmul.bf16 %v494, %v523
    %v540 = vmul.bf16 %v494, %v524
    %v541 = vmul.bf16 %v495, %v525
    %v542 = vmul.bf16 %v495, %v526
    %v543 = vmul.bf16 %v496, %v527
    %v544 = vmul.bf16 %v496, %v528
    %v545 = vpack.c.bf16 %v211, %v207
    %v547 = vsel %vm168, %v545, 0
    %549 = vmatprep.subr.bf16.mxu0 %v538
    %550 = vmatpush1.bf16.msra.mxu0 %v537
    %551 = vmatprep.subr.bf16.mxu0 %v540
    %552 = vmatpush1.bf16.msra.mxu0 %v539
    %553 = vmatprep.subr.bf16.mxu0 %v542
    %554 = vmatpush1.bf16.msra.mxu0 %v541
    %555 = vmatprep.subr.bf16.mxu0 %v544
    %556 = vmatpush1.bf16.msra.mxu0 %v543
    %557 = vmatprep.subr.bf16.mxu0 0
    %558 = vmatpush1.bf16.msra.mxu0 0
    %559 = vmatprep.subr.bf16.mxu0 0
    %560 = vmatpush1.bf16.msra.mxu0 0
    %561 = vmatprep.subr.bf16.mxu0 0
    %562 = vmatpush1.bf16.msra.mxu0 0
    %563 = vmatprep.subr.bf16.mxu0 0
    %564 = vmatpush1.bf16.msra.mxu0 0
    %565 = vmatprep.subr.bf16.mxu0 0
    %566 = vmatpush1.bf16.msra.mxu0 0
    %567 = vmatprep.subr.bf16.mxu0 0
    %568 = vmatpush1.bf16.msra.mxu0 0
    %569 = vmatprep.subr.bf16.mxu0 0
    %570 = vmatpush1.bf16.msra.mxu0 0
    %571 = vmatprep.subr.bf16.mxu0 0
    %572 = vmatpush1.bf16.msra.mxu0 0
    %573 = vmatprep.subr.bf16.mxu0 0
    %574 = vmatpush1.bf16.msra.mxu0 0
    %575 = vmatprep.subr.bf16.mxu0 0
    %576 = vmatpush1.bf16.msra.mxu0 0
    %577 = vmatprep.subr.bf16.mxu0 0
    %578 = vmatpush1.bf16.msra.mxu0 0
    %579 = vmatprep.subr.bf16.mxu0 0
    %580 = vmatpush1.bf16.msra.mxu0 0
    %581 = vmatprep.mubr.bf16.mxu0 0
    %582 = vmatmul.mubr.bf16.gmra.mrb[0].mxu0 %v547
    %v583 = vpop.f32.mrb[0].mxu0
    %v584 = vadd.f32 0.0, %v583
    %v585 = vpop.f32.mrb[0].mxu0
    %v586 = vadd.f32 0.0, %v585
    %v587 = vpop.f32.mrb[0].mxu0
    %v588 = vadd.f32 0.0, %v587
    %v589 = vpop.f32.mrb[0].mxu0
    %v590 = vadd.f32 0.0, %v589
    %591 = vdwg.mxu0
    %v592 = vmax.f32 %v584, %v586
    %593 = vmax.xlane.f32.xlu0 %v592
    %v594 = vpop.xlane.xlu0 %593
    %v595 = vmax.f32 %v588, %v590
    %596 = vmax.xlane.f32.xlu0 %v595
    %v597 = vpop.xlane.xlu0 %596
    %v598 = vsub.f32 %v584, %v594
    %v599 = vsub.f32 %v586, %v594
    %v600 = vsub.f32 %v588, %v597
    %v601 = vsub.f32 %v590, %v597
    %v602 = vmul.f32 %v598, 1.442695
    %v603 = vpow.pop %v602
    %v604 = vmul.f32 %v599, 1.442695
    %v605 = vpow.pop %v604
    %v606 = vmul.f32 %v600, 1.442695
    %v607 = vpow.pop %v606
    %v608 = vmul.f32 %v601, 1.442695
    %v609 = vpow.pop %v608
    %v610 = vmul.f32 %v603, %v100
    %v611 = vmul.f32 %v605, %v101
    %v612 = vmul.f32 %v607, %v102
    %v613 = vmul.f32 %v609, %v103
    %v614 = vpack.c.bf16 %v612, %v610
    %v615 = vpack.c.bf16 %v613, %v611
    %v616 = vpack.c.bf16 %v213, %v209
    %v649 = vunpack.c.l.b16 %v68
    %v650 = vunpack.c.l.b16 %v69
    %v651 = vunpack.c.l.b16 %v70
    %v652 = vunpack.c.l.b16 %v71
    %v653 = vunpack.c.l.b16 %v72
    %v654 = vunpack.c.l.b16 %v73
    %v655 = vunpack.c.l.b16 %v74
    %v656 = vunpack.c.l.b16 %v75
    %v657 = vunpack.c.l.b16 %v76
    %v658 = vunpack.c.l.b16 %v77
    %v659 = vunpack.c.l.b16 %v78
    %v660 = vunpack.c.l.b16 %v79
    %v661 = vunpack.c.l.b16 %v80
    %v662 = vunpack.c.l.b16 %v81
    %v663 = vunpack.c.l.b16 %v82
    %v664 = vunpack.c.l.b16 %v83
    %v665 = vunpack.c.l.b16 %v84
    %v666 = vunpack.c.l.b16 %v85
    %v667 = vunpack.c.l.b16 %v86
    %v668 = vunpack.c.l.b16 %v87
    %v669 = vunpack.c.l.b16 %v88
    %v670 = vunpack.c.l.b16 %v89
    %v671 = vunpack.c.l.b16 %v90
    %v672 = vunpack.c.l.b16 %v91
    %v673 = vunpack.c.l.b16 %v92
    %v674 = vunpack.c.l.b16 %v93
    %v675 = vunpack.c.l.b16 %v94
    %v676 = vunpack.c.l.b16 %v95
    %v677 = vunpack.c.l.b16 %v96
    %v678 = vunpack.c.l.b16 %v97
    %v679 = vunpack.c.l.b16 %v98
    %v680 = vunpack.c.l.b16 %v99
    %v681 = vpack.c.b16 %v650, %v649
    %v682 = vpack.c.b16 %v652, %v651
    %v683 = vpack.c.b16 %v654, %v653
    %v684 = vpack.c.b16 %v656, %v655
    %v685 = vpack.c.b16 %v658, %v657
    %v686 = vpack.c.b16 %v660, %v659
    %v687 = vpack.c.b16 %v662, %v661
    %v688 = vpack.c.b16 %v664, %v663
    %v689 = vpack.c.b16 %v666, %v665
    %v690 = vpack.c.b16 %v668, %v667
    %v691 = vpack.c.b16 %v670, %v669
    %v692 = vpack.c.b16 %v672, %v671
    %v693 = vpack.c.b16 %v674, %v673
    %v694 = vpack.c.b16 %v676, %v675
    %v695 = vpack.c.b16 %v678, %v677
    %v696 = vpack.c.b16 %v680, %v679
    %v713 = vmul.bf16 %v616, %v681
    %v714 = vmul.bf16 %v616, %v682
    %v715 = vmul.bf16 %v616, %v683
    %v716 = vmul.bf16 %v616, %v684
    %v717 = vmul.bf16 %v616, %v685
    %v718 = vmul.bf16 %v616, %v686
    %v719 = vmul.bf16 %v616, %v687
    %v720 = vmul.bf16 %v616, %v688
    %v721 = vmul.bf16 %v616, %v689
    %v722 = vmul.bf16 %v616, %v690
    %v723 = vmul.bf16 %v616, %v691
    %v724 = vmul.bf16 %v616, %v692
    %v725 = vmul.bf16 %v616, %v693
    %v726 = vmul.bf16 %v616, %v694
    %v727 = vmul.bf16 %v616, %v695
    %v728 = vmul.bf16 %v616, %v696
    %729 = vmatprep.subr.bf16.mxu0 0
    %730 = vmatpush1.bf16.msra.mxu0 %v713
    %731 = vmatprep.subr.bf16.mxu0 0
    %732 = vmatpush1.bf16.msra.mxu0 %v714
    %733 = vmatprep.subr.bf16.mxu0 0
    %734 = vmatpush1.bf16.msra.mxu0 %v715
    %735 = vmatprep.subr.bf16.mxu0 0
    %736 = vmatpush1.bf16.msra.mxu0 %v716
    %737 = vmatprep.subr.bf16.mxu0 0
    %738 = vmatpush1.bf16.msra.mxu0 %v717
    %739 = vmatprep.subr.bf16.mxu0 0
    %740 = vmatpush1.bf16.msra.mxu0 %v718
    %741 = vmatprep.subr.bf16.mxu0 0
    %742 = vmatpush1.bf16.msra.mxu0 %v719
    %743 = vmatprep.subr.bf16.mxu0 0
    %744 = vmatpush1.bf16.msra.mxu0 %v720
    %745 = vmatprep.subr.bf16.mxu0 0
    %746 = vmatpush1.bf16.msra.mxu0 %v721
    %747 = vmatprep.subr.bf16.mxu0 0
    %748 = vmatpush1.bf16.msra.mxu0 %v722
    %749 = vmatprep.subr.bf16.mxu0 0
    %750 = vmatpush1.bf16.msra.mxu0 %v723
    %751 = vmatprep.subr.bf16.mxu0 0
    %752 = vmatpush1.bf16.msra.mxu0 %v724
    %753 = vmatprep.subr.bf16.mxu0 0
    %754 = vmatpush1.bf16.msra.mxu0 %v725
    %755 = vmatprep.subr.bf16.mxu0 0
    %756 = vmatpush1.bf16.msra.mxu0 %v726
    %757 = vmatprep.subr.bf16.mxu0 0
    %758 = vmatpush1.bf16.msra.mxu0 %v727
    %759 = vmatprep.subr.bf16.mxu0 0
    %760 = vmatpush1.bf16.msra.mxu0 %v728
    %761 = vmatprep.mubr.bf16.mxu0 %v615
    %762 = vmatmul.mubr.bf16.gmra.mrb[0].mxu0 %v614
    %v763 = vpop.f32.mrb[0].mxu0
    %v764 = vadd.f32 0.0, %v763
    %v765 = vpop.f32.mrb[0].mxu0
    %v766 = vpop.f32.mrb[0].mxu0
    %v767 = vadd.f32 0.0, %v766
    %v768 = vpop.f32.mrb[0].mxu0
    %769 = vdwg.mxu0
    %770 = vmatprep.subr.bf16.mxu0 0
    %771 = vmatpush1.bf16.msra.mxu0 %v681
    %772 = vmatprep.subr.bf16.mxu0 0
    %773 = vmatpush1.bf16.msra.mxu0 %v682
    %774 = vmatprep.subr.bf16.mxu0 0
    %775 = vmatpush1.bf16.msra.mxu0 %v683
    %776 = vmatprep.subr.bf16.mxu0 0
    %777 = vmatpush1.bf16.msra.mxu0 %v684
    %778 = vmatprep.subr.bf16.mxu0 0
    %779 = vmatpush1.bf16.msra.mxu0 %v685
    %780 = vmatprep.subr.bf16.mxu0 0
    %781 = vmatpush1.bf16.msra.mxu0 %v686
    %782 = vmatprep.subr.bf16.mxu0 0
    %783 = vmatpush1.bf16.msra.mxu0 %v687
    %784 = vmatprep.subr.bf16.mxu0 0
    %785 = vmatpush1.bf16.msra.mxu0 %v688
    %786 = vmatprep.subr.bf16.mxu0 0
    %787 = vmatpush1.bf16.msra.mxu0 %v689
    %788 = vmatprep.subr.bf16.mxu0 0
    %789 = vmatpush1.bf16.msra.mxu0 %v690
    %790 = vmatprep.subr.bf16.mxu0 0
    %791 = vmatpush1.bf16.msra.mxu0 %v691
    %792 = vmatprep.subr.bf16.mxu0 0
    %793 = vmatpush1.bf16.msra.mxu0 %v692
    %794 = vmatprep.subr.bf16.mxu0 0
    %795 = vmatpush1.bf16.msra.mxu0 %v693
    %796 = vmatprep.subr.bf16.mxu0 0
    %797 = vmatpush1.bf16.msra.mxu0 %v694
    %798 = vmatprep.subr.bf16.mxu0 0
    %799 = vmatpush1.bf16.msra.mxu0 %v695
    %800 = vmatprep.subr.bf16.mxu0 0
    %801 = vmatpush1.bf16.msra.mxu0 %v696
    %802 = vmatprep.mubr.bf16.mxu0 %v615
    %803 = vmatmul.mubr.bf16.gmra.mrb[0].mxu0 %v614
    %v804 = vpop.f32.mrb[0].mxu0
    %v805 = vadd.f32 1e-30, %v804
    %v806 = vpop.f32.mrb[0].mxu0
    %v807 = vpop.f32.mrb[0].mxu0
    %v808 = vadd.f32 1e-30, %v807
    %v809 = vpop.f32.mrb[0].mxu0
    %810 = vdwg.mxu0
    %v811 = vrcp.pop %v805
    %v812 = vrcp.pop %v808
    %v813 = vmul.f32 %v764, %v811
    %v814 = vmul.f32 %v767, %v812
    %v815 = vld [vmem:[#allocation5 + $0x1c0] sm:$0xf]
    %v816 = vld [vmem:[#allocation5 + $0x1c8] sm:$0xf]
    %v817 = vld [vmem:[#allocation5 + $0x1d0] sm:$0xf]
    %v818 = vld [vmem:[#allocation5 + $0x1d8] sm:$0xf]
    %v819 = vld [vmem:[#allocation5 + $0x1e0] sm:$0xf]
    %v820 = vld [vmem:[#allocation5 + $0x1e8] sm:$0xf]
    %v821 = vld [vmem:[#allocation5 + $0x1f0] sm:$0xf]
    %v822 = vld [vmem:[#allocation5 + $0x1f8] sm:$0xf]
    %v823 = vld [vmem:[#allocation7 + $0x22] ss:$0 sm:$0xff]
    %v824 = vpack.c.bf16 %v814, %v813
    %v833 = vunpack.c.l.b16 %v815
    %v834 = vunpack.c.l.b16 %v816
    %v835 = vunpack.c.l.b16 %v817
    %v836 = vunpack.c.l.b16 %v818
    %v837 = vunpack.c.l.b16 %v819
    %v838 = vunpack.c.l.b16 %v820
    %v839 = vunpack.c.l.b16 %v821
    %v840 = vunpack.c.l.b16 %v822
    %v841 = vpack.c.b16 %v834, %v833
    %v842 = vpack.c.b16 %v836, %v835
    %v843 = vpack.c.b16 %v838, %v837
    %v844 = vpack.c.b16 %v840, %v839
    %v850 = vsel %vm168, %v824, 0
    %852 = vmatprep.subr.bf16.mxu0 0
    %853 = vmatpush1.bf16.msra.mxu0 %v841
    %854 = vmatprep.subr.bf16.mxu0 0
    %855 = vmatpush1.bf16.msra.mxu0 %v842
    %856 = vmatprep.subr.bf16.mxu0 0
    %857 = vmatpush1.bf16.msra.mxu0 %v843
    %858 = vmatprep.subr.bf16.mxu0 0
    %859 = vmatpush1.bf16.msra.mxu0 %v844
    %860 = vmatprep.subr.bf16.mxu0 0
    %861 = vmatpush1.bf16.msra.mxu0 0
    %862 = vmatprep.subr.bf16.mxu0 0
    %863 = vmatpush1.bf16.msra.mxu0 0
    %864 = vmatprep.subr.bf16.mxu0 0
    %865 = vmatpush1.bf16.msra.mxu0 0
    %866 = vmatprep.subr.bf16.mxu0 0
    %867 = vmatpush1.bf16.msra.mxu0 0
    %868 = vmatprep.subr.bf16.mxu0 0
    %869 = vmatpush1.bf16.msra.mxu0 0
    %870 = vmatprep.subr.bf16.mxu0 0
    %871 = vmatpush1.bf16.msra.mxu0 0
    %872 = vmatprep.subr.bf16.mxu0 0
    %873 = vmatpush1.bf16.msra.mxu0 0
    %874 = vmatprep.subr.bf16.mxu0 0
    %875 = vmatpush1.bf16.msra.mxu0 0
    %876 = vmatprep.subr.bf16.mxu0 0
    %877 = vmatpush1.bf16.msra.mxu0 0
    %878 = vmatprep.subr.bf16.mxu0 0
    %879 = vmatpush1.bf16.msra.mxu0 0
    %880 = vmatprep.subr.bf16.mxu0 0
    %881 = vmatpush1.bf16.msra.mxu0 0
    %882 = vmatprep.subr.bf16.mxu0 0
    %883 = vmatpush1.bf16.msra.mxu0 0
    %884 = vmatprep.mubr.bf16.mxu0 0
    %885 = vmatmul.mubr.bf16.gmra.mrb[0].mxu0 %v850
    %v886 = vpop.f32.mrb[0].mxu0
    %v887 = vadd.f32 %v823, %v886
    %v888 = vpop.f32.mrb[0].mxu0
    %v889 = vpop.f32.mrb[0].mxu0
    %v890 = vadd.f32 %v823, %v889
    %v891 = vpop.f32.mrb[0].mxu0
    %892 = vdwg.mxu0
    %v893 = vld [vmem:[#allocation7 + $0x24] ss:$0 sm:$0xff]
    %v894 = vld [vmem:[#allocation7 + $0x25] ss:$0 sm:$0xff]
    %v895 = vadd.f32 %v104, %v887
    %v896 = vadd.f32 %v105, %v890
    %v897 = vsel %vm440, %v895, 0.0
    %898 = vadd.xlane.f32.xlu0 %v897
    %v899 = vpop.xlane.xlu0 %898
    %v900 = vsel %vm440, %v896, 0.0
    %901 = vadd.xlane.f32.xlu0 %v900
    %v902 = vpop.xlane.xlu0 %901
    %v903 = vrcp.pop 32.0
    %v904 = vmul.f32 %v899, %v903
    %v905 = vmul.f32 %v902, %v903
    %v906 = vsub.f32 %v895, %v904
    %v907 = vsub.f32 %v896, %v905
    %v908 = vmul.f32 %v906, %v906
    %v909 = vmul.f32 %v907, %v907
    %v910 = vsel %vm440, %v908, 0.0
    %911 = vadd.xlane.f32.xlu0 %v910
    %v912 = vpop.xlane.xlu0 %911
    %v913 = vsel %vm440, %v909, 0.0
    %914 = vadd.xlane.f32.xlu0 %v913
    %v915 = vpop.xlane.xlu0 %914
    %v916 = vmul.f32 %v912, %v903
    %v917 = vmul.f32 %v915, %v903
    %v918 = vadd.f32 %v916, 1e-05
    %v919 = vadd.f32 %v917, 1e-05
    %v920 = vrsqrt.pop %v918
    %v921 = vrsqrt.pop %v919
    %v922 = vmul.f32 %v906, %v920
    %v923 = vmul.f32 %v907, %v921
    %v924 = vmul.f32 %v922, %v893
    %v925 = vmul.f32 %v923, %v893
    %v926 = vadd.f32 %v924, %v894
    %v927 = vadd.f32 %v925, %v894
    %930 = vrot.lane.b32.xlu0 %v895, 96
    %v931 = vpop.permute.xlu0 %930
    %932 = vrot.lane.b32.xlu0 %v896, 96
    %v933 = vpop.permute.xlu0 %932
    %v936 = vsel %vm440, %v931, 0.0
    %937 = vadd.xlane.f32.xlu0 %v936
    %v938 = vpop.xlane.xlu0 %937
    %v939 = vsel %vm440, %v933, 0.0
    %940 = vadd.xlane.f32.xlu0 %v939
    %v941 = vpop.xlane.xlu0 %940
    %v942 = vmul.f32 %v938, %v903
    %v943 = vmul.f32 %v941, %v903
    %v944 = vsub.f32 %v895, %v942
    %v945 = vsub.f32 %v896, %v943
    %v946 = vmul.f32 %v944, %v944
    %v947 = vmul.f32 %v945, %v945
    %950 = vrot.lane.b32.xlu0 %v946, 96
    %v951 = vpop.permute.xlu0 %950
    %952 = vrot.lane.b32.xlu0 %v947, 96
    %v953 = vpop.permute.xlu0 %952
    %v956 = vsel %vm440, %v951, 0.0
    %957 = vadd.xlane.f32.xlu0 %v956
    %v958 = vpop.xlane.xlu0 %957
    %v959 = vsel %vm440, %v953, 0.0
    %960 = vadd.xlane.f32.xlu0 %v959
    %v961 = vpop.xlane.xlu0 %960
    %v962 = vmul.f32 %v958, %v903
    %v963 = vmul.f32 %v961, %v903
    %v964 = vadd.f32 %v962, 1e-05
    %v965 = vadd.f32 %v963, 1e-05
    %v966 = vrsqrt.pop %v964
    %v967 = vrsqrt.pop %v965
    %v968 = vmul.f32 %v944, %v966
    %v969 = vmul.f32 %v945, %v967
    %v970 = vmul.f32 %v968, %v893
    %v971 = vmul.f32 %v969, %v893
    %v972 = vadd.f32 %v970, %v894
    %v973 = vadd.f32 %v971, %v894
    %v974 = vsel %vm440, %v926, %v972
    %v975 = vsel %vm440, %v927, %v973
    %v976 = vld [vmem:[#allocation5 + $0x180] sm:$0xff]
    %v977 = vld [vmem:[#allocation5 + $0x188] sm:$0xff]
    %v978 = vld [vmem:[#allocation5 + $0x190] sm:$0xff]
    %v979 = vld [vmem:[#allocation5 + $0x198] sm:$0xff]
    %v980 = vld [vmem:[#allocation5 + $0x1a0] sm:$0xff]
    %v981 = vld [vmem:[#allocation5 + $0x1a8] sm:$0xff]
    %v982 = vld [vmem:[#allocation5 + $0x1b0] sm:$0xff]
    %v983 = vld [vmem:[#allocation5 + $0x1b8] sm:$0xff]
    %s984 = scalar_lea.vmem [#allocation7], 33
    %v985 = vld [vmem:[%s984] ss:$8 sm:$0x3]
    %v986 = vpack.c.bf16 %v975, %v974
    %v988 = vlaneseq
    %v989 = vshrl.u32 %v988, 7
    %v990 = vsub.s32 0, %v989
    %v991 = vrot.slane %v985, %v990
    %v992 = vlaneseq
    %v993 = vshrl.u32 %v992, 7
    %v994 = vsub.s32 1, %v993
    %v995 = vrot.slane %v985, %v994
    %v1006 = vunpack.c.l.b16 %v976
    %v1007 = vunpack.c.h.b16 %v976
    %v1008 = vunpack.c.l.b16 %v977
    %v1009 = vunpack.c.h.b16 %v977
    %v1010 = vunpack.c.l.b16 %v978
    %v1011 = vunpack.c.h.b16 %v978
    %v1012 = vunpack.c.l.b16 %v979
    %v1013 = vunpack.c.h.b16 %v979
    %v1014 = vunpack.c.l.b16 %v980
    %v1015 = vunpack.c.h.b16 %v980
    %v1016 = vunpack.c.l.b16 %v981
    %v1017 = vunpack.c.h.b16 %v981
    %v1018 = vunpack.c.l.b16 %v982
    %v1019 = vunpack.c.h.b16 %v982
    %v1020 = vunpack.c.l.b16 %v983
    %v1021 = vunpack.c.h.b16 %v983
    %v1022 = vpack.c.b16 %v1008, %v1006
    %v1023 = vpack.c.b16 %v1009, %v1007
    %v1024 = vpack.c.b16 %v1012, %v1010
    %v1025 = vpack.c.b16 %v1013, %v1011
    %v1026 = vpack.c.b16 %v1016, %v1014
    %v1027 = vpack.c.b16 %v1017, %v1015
    %v1028 = vpack.c.b16 %v1020, %v1018
    %v1029 = vpack.c.b16 %v1021, %v1019
    %v1039 = vsel %vm168, %v986, 0
    %1041 = vmatprep.subr.bf16.mxu0 %v1023
    %1042 = vmatpush1.bf16.msra.mxu0 %v1022
    %1043 = vmatprep.subr.bf16.mxu0 %v1025
    %1044 = vmatpush1.bf16.msra.mxu0 %v1024
    %1045 = vmatprep.subr.bf16.mxu0 %v1027
    %1046 = vmatpush1.bf16.msra.mxu0 %v1026
    %1047 = vmatprep.subr.bf16.mxu0 %v1029
    %1048 = vmatpush1.bf16.msra.mxu0 %v1028
    %1049 = vmatprep.subr.bf16.mxu0 0
    %1050 = vmatpush1.bf16.msra.mxu0 0
    %1051 = vmatprep.subr.bf16.mxu0 0
    %1052 = vmatpush1.bf16.msra.mxu0 0
    %1053 = vmatprep.subr.bf16.mxu0 0
    %1054 = vmatpush1.bf16.msra.mxu0 0
    %1055 = vmatprep.subr.bf16.mxu0 0
    %1056 = vmatpush1.bf16.msra.mxu0 0
    %1057 = vmatprep.subr.bf16.mxu0 0
    %1058 = vmatpush1.bf16.msra.mxu0 0
    %1059 = vmatprep.subr.bf16.mxu0 0
    %1060 = vmatpush1.bf16.msra.mxu0 0
    %1061 = vmatprep.subr.bf16.mxu0 0
    %1062 = vmatpush1.bf16.msra.mxu0 0
    %1063 = vmatprep.subr.bf16.mxu0 0
    %1064 = vmatpush1.bf16.msra.mxu0 0
    %1065 = vmatprep.subr.bf16.mxu0 0
    %1066 = vmatpush1.bf16.msra.mxu0 0
    %1067 = vmatprep.subr.bf16.mxu0 0
    %1068 = vmatpush1.bf16.msra.mxu0 0
    %1069 = vmatprep.subr.bf16.mxu0 0
    %1070 = vmatpush1.bf16.msra.mxu0 0
    %1071 = vmatprep.subr.bf16.mxu0 0
    %1072 = vmatpush1.bf16.msra.mxu0 0
    %1073 = vmatprep.mubr.bf16.mxu0 0
    %1074 = vmatmul.mubr.bf16.gmra.mrb[0].mxu0 %v1039
    %v1075 = vpop.f32.mrb[0].mxu0
    %v1076 = vadd.f32 %v991, %v1075
    %v1077 = vpop.f32.mrb[0].mxu0
    %v1078 = vadd.f32 %v995, %v1077
    %v1079 = vpop.f32.mrb[0].mxu0
    %v1080 = vadd.f32 %v991, %v1079
    %v1081 = vpop.f32.mrb[0].mxu0
    %v1082 = vadd.f32 %v995, %v1081
    %1083 = vdwg.mxu0
    %1086 = vrot.lane.b32.xlu0 %v1076, 64
    %v1087 = vpop.permute.xlu0 %1086
    %1088 = vrot.lane.b32.xlu0 %v1080, 64
    %v1089 = vpop.permute.xlu0 %1088
    %1092 = vxpose.xlu0.b32.start [1/16] %v1087, 128
    %1093 = vxpose.xlu0.b32.cont [2/16] %v1089, 128
    %1094 = vxpose.xlu0.b32.cont [3/16] 0.0, 128
    %1095 = vxpose.xlu0.b32.cont [4/16] 0.0, 128
    %1096 = vxpose.xlu0.b32.cont [5/16] 0.0, 128
    %1097 = vxpose.xlu0.b32.cont [6/16] 0.0, 128
    %1098 = vxpose.xlu0.b32.cont [7/16] 0.0, 128
    %1099 = vxpose.xlu0.b32.cont [8/16] 0.0, 128
    %1100 = vxpose.xlu0.b32.cont [9/16] 0.0, 128
    %1101 = vxpose.xlu0.b32.cont [10/16] 0.0, 128
    %1102 = vxpose.xlu0.b32.cont [11/16] 0.0, 128
    %1103 = vxpose.xlu0.b32.cont [12/16] 0.0, 128
    %1104 = vxpose.xlu0.b32.cont [13/16] 0.0, 128
    %1105 = vxpose.xlu0.b32.cont [14/16] 0.0, 128
    %1106 = vxpose.xlu0.b32.cont [15/16] 0.0, 128
    %1107 = vxpose.xlu0.b32.end [16/16] 0.0, 128
    %v1108 = vpop.trf.xlu0
    %v1109 = vpop.trf.xlu0
    %v1110 = vpop.trf.xlu0
    %v1111 = vpop.trf.xlu0
    %v1112 = vpop.trf.xlu0
    %v1113 = vpop.trf.xlu0
    %v1114 = vpop.trf.xlu0
    %v1115 = vpop.trf.xlu0
    %v1116 = vpop.trf.xlu0
    %v1117 = vpop.trf.xlu0
    %v1118 = vpop.trf.xlu0
    %v1119 = vpop.trf.xlu0
    %v1120 = vpop.trf.xlu0
    %v1121 = vpop.trf.xlu0
    %v1122 = vpop.trf.xlu0
    %v1123 = vpop.trf.xlu0
    %1132 = vrot.lane.b32.xlu0 %v1108, 16
    %v1133 = vpop.permute.xlu0 %1132
    %1134 = vrot.lane.b32.xlu0 %v1109, 16
    %v1135 = vpop.permute.xlu0 %1134
    %1136 = vrot.lane.b32.xlu0 %v1110, 16
    %v1137 = vpop.permute.xlu0 %1136
    %1138 = vrot.lane.b32.xlu0 %v1111, 16
    %v1139 = vpop.permute.xlu0 %1138
    %1140 = vrot.lane.b32.xlu0 %v1112, 16
    %v1141 = vpop.permute.xlu0 %1140
    %1142 = vrot.lane.b32.xlu0 %v1113, 16
    %v1143 = vpop.permute.xlu0 %1142
    %1144 = vrot.lane.b32.xlu0 %v1114, 16
    %v1145 = vpop.permute.xlu0 %1144
    %1146 = vrot.lane.b32.xlu0 %v1115, 16
    %v1147 = vpop.permute.xlu0 %1146
    %1156 = vrot.lane.b32.xlu0 %v1108, 32
    %v1157 = vpop.permute.xlu0 %1156
    %1158 = vrot.lane.b32.xlu0 %v1109, 32
    %v1159 = vpop.permute.xlu0 %1158
    %1160 = vrot.lane.b32.xlu0 %v1110, 32
    %v1161 = vpop.permute.xlu0 %1160
    %1162 = vrot.lane.b32.xlu0 %v1111, 32
    %v1163 = vpop.permute.xlu0 %1162
    %1164 = vrot.lane.b32.xlu0 %v1112, 32
    %v1165 = vpop.permute.xlu0 %1164
    %1166 = vrot.lane.b32.xlu0 %v1113, 32
    %v1167 = vpop.permute.xlu0 %1166
    %1168 = vrot.lane.b32.xlu0 %v1114, 32
    %v1169 = vpop.permute.xlu0 %1168
    %1170 = vrot.lane.b32.xlu0 %v1115, 32
    %v1171 = vpop.permute.xlu0 %1170
    %1180 = vrot.lane.b32.xlu0 %v1108, 48
    %v1181 = vpop.permute.xlu0 %1180
    %1182 = vrot.lane.b32.xlu0 %v1109, 48
    %v1183 = vpop.permute.xlu0 %1182
    %1184 = vrot.lane.b32.xlu0 %v1110, 48
    %v1185 = vpop.permute.xlu0 %1184
    %1186 = vrot.lane.b32.xlu0 %v1111, 48
    %v1187 = vpop.permute.xlu0 %1186
    %1188 = vrot.lane.b32.xlu0 %v1112, 48
    %v1189 = vpop.permute.xlu0 %1188
    %1190 = vrot.lane.b32.xlu0 %v1113, 48
    %v1191 = vpop.permute.xlu0 %1190
    %1192 = vrot.lane.b32.xlu0 %v1114, 48
    %v1193 = vpop.permute.xlu0 %1192
    %1194 = vrot.lane.b32.xlu0 %v1115, 48
    %v1195 = vpop.permute.xlu0 %1194
    %1204 = vrot.lane.b32.xlu0 %v1108, 64
    %v1205 = vpop.permute.xlu0 %1204
    %1206 = vrot.lane.b32.xlu0 %v1109, 64
    %v1207 = vpop.permute.xlu0 %1206
    %1208 = vrot.lane.b32.xlu0 %v1110, 64
    %v1209 = vpop.permute.xlu0 %1208
    %1210 = vrot.lane.b32.xlu0 %v1111, 64
    %v1211 = vpop.permute.xlu0 %1210
    %1212 = vrot.lane.b32.xlu0 %v1112, 64
    %v1213 = vpop.permute.xlu0 %1212
    %1214 = vrot.lane.b32.xlu0 %v1113, 64
    %v1215 = vpop.permute.xlu0 %1214
    %1216 = vrot.lane.b32.xlu0 %v1114, 64
    %v1217 = vpop.permute.xlu0 %1216
    %1218 = vrot.lane.b32.xlu0 %v1115, 64
    %v1219 = vpop.permute.xlu0 %1218
    %1228 = vrot.lane.b32.xlu0 %v1108, 80
    %v1229 = vpop.permute.xlu0 %1228
    %1230 = vrot.lane.b32.xlu0 %v1109, 80
    %v1231 = vpop.permute.xlu0 %1230
    %1232 = vrot.lane.b32.xlu0 %v1110, 80
    %v1233 = vpop.permute.xlu0 %1232
    %1234 = vrot.lane.b32.xlu0 %v1111, 80
    %v1235 = vpop.permute.xlu0 %1234
    %1236 = vrot.lane.b32.xlu0 %v1112, 80
    %v1237 = vpop.permute.xlu0 %1236
    %1238 = vrot.lane.b32.xlu0 %v1113, 80
    %v1239 = vpop.permute.xlu0 %1238
    %1240 = vrot.lane.b32.xlu0 %v1114, 80
    %v1241 = vpop.permute.xlu0 %1240
    %1242 = vrot.lane.b32.xlu0 %v1115, 80
    %v1243 = vpop.permute.xlu0 %1242
    %1252 = vrot.lane.b32.xlu0 %v1108, 96
    %v1253 = vpop.permute.xlu0 %1252
    %1254 = vrot.lane.b32.xlu0 %v1109, 96
    %v1255 = vpop.permute.xlu0 %1254
    %1256 = vrot.lane.b32.xlu0 %v1110, 96
    %v1257 = vpop.permute.xlu0 %1256
    %1258 = vrot.lane.b32.xlu0 %v1111, 96
    %v1259 = vpop.permute.xlu0 %1258
    %1260 = vrot.lane.b32.xlu0 %v1112, 96
    %v1261 = vpop.permute.xlu0 %1260
    %1262 = vrot.lane.b32.xlu0 %v1113, 96
    %v1263 = vpop.permute.xlu0 %1262
    %1264 = vrot.lane.b32.xlu0 %v1114, 96
    %v1265 = vpop.permute.xlu0 %1264
    %1266 = vrot.lane.b32.xlu0 %v1115, 96
    %v1267 = vpop.permute.xlu0 %1266
    %1276 = vrot.lane.b32.xlu0 %v1108, 112
    %v1277 = vpop.permute.xlu0 %1276
    %1278 = vrot.lane.b32.xlu0 %v1109, 112
    %v1279 = vpop.permute.xlu0 %1278
    %1280 = vrot.lane.b32.xlu0 %v1110, 112
    %v1281 = vpop.permute.xlu0 %1280
    %1282 = vrot.lane.b32.xlu0 %v1111, 112
    %v1283 = vpop.permute.xlu0 %1282
    %1284 = vrot.lane.b32.xlu0 %v1112, 112
    %v1285 = vpop.permute.xlu0 %1284
    %1286 = vrot.lane.b32.xlu0 %v1113, 112
    %v1287 = vpop.permute.xlu0 %1286
    %1288 = vrot.lane.b32.xlu0 %v1114, 112
    %v1289 = vpop.permute.xlu0 %1288
    %1290 = vrot.lane.b32.xlu0 %v1115, 112
    %v1291 = vpop.permute.xlu0 %1290
    %v1300 = vsel %vm431, %v1108, %v1133
    %v1301 = vsel %vm431, %v1109, %v1135
    %v1302 = vsel %vm431, %v1110, %v1137
    %v1303 = vsel %vm431, %v1111, %v1139
    %v1304 = vsel %vm431, %v1112, %v1141
    %v1305 = vsel %vm431, %v1113, %v1143
    %v1306 = vsel %vm431, %v1114, %v1145
    %v1307 = vsel %vm431, %v1115, %v1147
    %v1308 = vsel %vm440, %v1300, %v1157
    %v1309 = vsel %vm440, %v1301, %v1159
    %v1310 = vsel %vm440, %v1302, %v1161
    %v1311 = vsel %vm440, %v1303, %v1163
    %v1312 = vsel %vm440, %v1304, %v1165
    %v1313 = vsel %vm440, %v1305, %v1167
    %v1314 = vsel %vm440, %v1306, %v1169
    %v1315 = vsel %vm440, %v1307, %v1171
    %v1316 = vsel %vm449, %v1308, %v1181
    %v1317 = vsel %vm449, %v1309, %v1183
    %v1318 = vsel %vm449, %v1310, %v1185
    %v1319 = vsel %vm449, %v1311, %v1187
    %v1320 = vsel %vm449, %v1312, %v1189
    %v1321 = vsel %vm449, %v1313, %v1191
    %v1322 = vsel %vm449, %v1314, %v1193
    %v1323 = vsel %vm449, %v1315, %v1195
    %v1324 = vsel %vm168, %v1316, %v1205
    %v1325 = vsel %vm168, %v1317, %v1207
    %v1326 = vsel %vm168, %v1318, %v1209
    %v1327 = vsel %vm168, %v1319, %v1211
    %v1328 = vsel %vm168, %v1320, %v1213
    %v1329 = vsel %vm168, %v1321, %v1215
    %v1330 = vsel %vm168, %v1322, %v1217
    %v1331 = vsel %vm168, %v1323, %v1219
    %v1332 = vsel %vm466, %v1324, %v1229
    %v1333 = vsel %vm466, %v1325, %v1231
    %v1334 = vsel %vm466, %v1326, %v1233
    %v1335 = vsel %vm466, %v1327, %v1235
    %v1336 = vsel %vm466, %v1328, %v1237
    %v1337 = vsel %vm466, %v1329, %v1239
    %v1338 = vsel %vm466, %v1330, %v1241
    %v1339 = vsel %vm466, %v1331, %v1243
    %v1340 = vsel %vm475, %v1332, %v1253
    %v1341 = vsel %vm475, %v1333, %v1255
    %v1342 = vsel %vm475, %v1334, %v1257
    %v1343 = vsel %vm475, %v1335, %v1259
    %v1344 = vsel %vm475, %v1336, %v1261
    %v1345 = vsel %vm475, %v1337, %v1263
    %v1346 = vsel %vm475, %v1338, %v1265
    %v1347 = vsel %vm475, %v1339, %v1267
    %v1348 = vsel %vm484, %v1340, %v1277
    %v1349 = vsel %vm484, %v1341, %v1279
    %v1350 = vsel %vm484, %v1342, %v1281
    %v1351 = vsel %vm484, %v1343, %v1283
    %v1352 = vsel %vm484, %v1344, %v1285
    %v1353 = vsel %vm484, %v1345, %v1287
    %v1354 = vsel %vm484, %v1346, %v1289
    %v1355 = vsel %vm484, %v1347, %v1291
    %v1356 = vpack.c.bf16 %v1349, %v1348
    %v1357 = vpack.c.bf16 %v1351, %v1350
    %v1358 = vpack.c.bf16 %v1353, %v1352
    %v1359 = vpack.c.bf16 %v1355, %v1354
    %v1360 = vmul.bf16 %v1356, %v521
    %v1361 = vmul.bf16 %v1356, %v522
    %v1362 = vmul.bf16 %v1357, %v523
    %v1363 = vmul.bf16 %v1357, %v524
    %v1364 = vmul.bf16 %v1358, %v525
    %v1365 = vmul.bf16 %v1358, %v526
    %v1366 = vmul.bf16 %v1359, %v527
    %v1367 = vmul.bf16 %v1359, %v528
    %v1368 = vpack.c.bf16 %v1080, %v1076
    %v1370 = vsel %vm168, %v1368, 0
    %1372 = vmatprep.subr.bf16.mxu0 %v1361
    %1373 = vmatpush1.bf16.msra.mxu0 %v1360
    %1374 = vmatprep.subr.bf16.mxu0 %v1363
    %1375 = vmatpush1.bf16.msra.mxu0 %v1362
    %1376 = vmatprep.subr.bf16.mxu0 %v1365
    %1377 = vmatpush1.bf16.msra.mxu0 %v1364
    %1378 = vmatprep.subr.bf16.mxu0 %v1367
    %1379 = vmatpush1.bf16.msra.mxu0 %v1366
    %1380 = vmatprep.subr.bf16.mxu0 0
    %1381 = vmatpush1.bf16.msra.mxu0 0
    %1382 = vmatprep.subr.bf16.mxu0 0
    %1383 = vmatpush1.bf16.msra.mxu0 0
    %1384 = vmatprep.subr.bf16.mxu0 0
    %1385 = vmatpush1.bf16.msra.mxu0 0
    %1386 = vmatprep.subr.bf16.mxu0 0
    %1387 = vmatpush1.bf16.msra.mxu0 0
    %1388 = vmatprep.subr.bf16.mxu0 0
    %1389 = vmatpush1.bf16.msra.mxu0 0
    %1390 = vmatprep.subr.bf16.mxu0 0
    %1391 = vmatpush1.bf16.msra.mxu0 0
    %1392 = vmatprep.subr.bf16.mxu0 0
    %1393 = vmatpush1.bf16.msra.mxu0 0
    %1394 = vmatprep.subr.bf16.mxu0 0
    %1395 = vmatpush1.bf16.msra.mxu0 0
    %1396 = vmatprep.subr.bf16.mxu0 0
    %1397 = vmatpush1.bf16.msra.mxu0 0
    %1398 = vmatprep.subr.bf16.mxu0 0
    %1399 = vmatpush1.bf16.msra.mxu0 0
    %1400 = vmatprep.subr.bf16.mxu0 0
    %1401 = vmatpush1.bf16.msra.mxu0 0
    %1402 = vmatprep.subr.bf16.mxu0 0
    %1403 = vmatpush1.bf16.msra.mxu0 0
    %1404 = vmatprep.mubr.bf16.mxu0 0
    %1405 = vmatmul.mubr.bf16.gmra.mrb[0].mxu0 %v1370
    %v1406 = vpop.f32.mrb[0].mxu0
    %v1407 = vadd.f32 0.0, %v1406
    %v1408 = vpop.f32.mrb[0].mxu0
    %v1409 = vadd.f32 0.0, %v1408
    %v1410 = vpop.f32.mrb[0].mxu0
    %v1411 = vadd.f32 0.0, %v1410
    %v1412 = vpop.f32.mrb[0].mxu0
    %v1413 = vadd.f32 0.0, %v1412
    %1414 = vdwg.mxu0
    %v1415 = vmax.f32 %v1407, %v1409
    %1416 = vmax.xlane.f32.xlu0 %v1415
    %v1417 = vpop.xlane.xlu0 %1416
    %v1418 = vmax.f32 %v1411, %v1413
    %1419 = vmax.xlane.f32.xlu0 %v1418
    %v1420 = vpop.xlane.xlu0 %1419
    %v1421 = vsub.f32 %v1407, %v1417
    %v1422 = vsub.f32 %v1409, %v1417
    %v1423 = vsub.f32 %v1411, %v1420
    %v1424 = vsub.f32 %v1413, %v1420
    %v1425 = vmul.f32 %v1421, 1.442695
    %v1426 = vpow.pop %v1425
    %v1427 = vmul.f32 %v1422, 1.442695
    %v1428 = vpow.pop %v1427
    %v1429 = vmul.f32 %v1423, 1.442695
    %v1430 = vpow.pop %v1429
    %v1431 = vmul.f32 %v1424, 1.442695
    %v1432 = vpow.pop %v1431
    %v1433 = vmul.f32 %v1426, %v100
    %v1434 = vmul.f32 %v1428, %v101
    %v1435 = vmul.f32 %v1430, %v102
    %v1436 = vmul.f32 %v1432, %v103
    %v1437 = vpack.c.bf16 %v1435, %v1433
    %v1438 = vpack.c.bf16 %v1436, %v1434
    %v1439 = vpack.c.bf16 %v1082, %v1078
    %v1440 = vmul.bf16 %v1439, %v681
    %v1441 = vmul.bf16 %v1439, %v682
    %v1442 = vmul.bf16 %v1439, %v683
    %v1443 = vmul.bf16 %v1439, %v684
    %v1444 = vmul.bf16 %v1439, %v685
    %v1445 = vmul.bf16 %v1439, %v686
    %v1446 = vmul.bf16 %v1439, %v687
    %v1447 = vmul.bf16 %v1439, %v688
    %v1448 = vmul.bf16 %v1439, %v689
    %v1449 = vmul.bf16 %v1439, %v690
    %v1450 = vmul.bf16 %v1439, %v691
    %v1451 = vmul.bf16 %v1439, %v692
    %v1452 = vmul.bf16 %v1439, %v693
    %v1453 = vmul.bf16 %v1439, %v694
    %v1454 = vmul.bf16 %v1439, %v695
    %v1455 = vmul.bf16 %v1439, %v696
    %1456 = vmatprep.subr.bf16.mxu0 0
    %1457 = vmatpush1.bf16.msra.mxu0 %v1440
    %1458 = vmatprep.subr.bf16.mxu0 0
    %1459 = vmatpush1.bf16.msra.mxu0 %v1441
    %1460 = vmatprep.subr.bf16.mxu0 0
    %1461 = vmatpush1.bf16.msra.mxu0 %v1442
    %1462 = vmatprep.subr.bf16.mxu0 0
    %1463 = vmatpush1.bf16.msra.mxu0 %v1443
    %1464 = vmatprep.subr.bf16.mxu0 0
    %1465 = vmatpush1.bf16.msra.mxu0 %v1444
    %1466 = vmatprep.subr.bf16.mxu0 0
    %1467 = vmatpush1.bf16.msra.mxu0 %v1445
    %1468 = vmatprep.subr.bf16.mxu0 0
    %1469 = vmatpush1.bf16.msra.mxu0 %v1446
    %1470 = vmatprep.subr.bf16.mxu0 0
    %1471 = vmatpush1.bf16.msra.mxu0 %v1447
    %1472 = vmatprep.subr.bf16.mxu0 0
    %1473 = vmatpush1.bf16.msra.mxu0 %v1448
    %1474 = vmatprep.subr.bf16.mxu0 0
    %1475 = vmatpush1.bf16.msra.mxu0 %v1449
    %1476 = vmatprep.subr.bf16.mxu0 0
    %1477 = vmatpush1.bf16.msra.mxu0 %v1450
    %1478 = vmatprep.subr.bf16.mxu0 0
    %1479 = vmatpush1.bf16.msra.mxu0 %v1451
    %1480 = vmatprep.subr.bf16.mxu0 0
    %1481 = vmatpush1.bf16.msra.mxu0 %v1452
    %1482 = vmatprep.subr.bf16.mxu0 0
    %1483 = vmatpush1.bf16.msra.mxu0 %v1453
    %1484 = vmatprep.subr.bf16.mxu0 0
    %1485 = vmatpush1.bf16.msra.mxu0 %v1454
    %1486 = vmatprep.subr.bf16.mxu0 0
    %1487 = vmatpush1.bf16.msra.mxu0 %v1455
    %1488 = vmatprep.mubr.bf16.mxu0 %v1438
    %1489 = vmatmul.mubr.bf16.gmra.mrb[0].mxu0 %v1437
    %v1490 = vpop.f32.mrb[0].mxu0
    %v1491 = vadd.f32 0.0, %v1490
    %v1492 = vpop.f32.mrb[0].mxu0
    %v1493 = vpop.f32.mrb[0].mxu0
    %v1494 = vadd.f32 0.0, %v1493
    %v1495 = vpop.f32.mrb[0].mxu0
    %1496 = vdwg.mxu0
    %1497 = vmatprep.subr.bf16.mxu0 0
    %1498 = vmatpush1.bf16.msra.mxu0 %v681
    %1499 = vmatprep.subr.bf16.mxu0 0
    %1500 = vmatpush1.bf16.msra.mxu0 %v682
    %1501 = vmatprep.subr.bf16.mxu0 0
    %1502 = vmatpush1.bf16.msra.mxu0 %v683
    %1503 = vmatprep.subr.bf16.mxu0 0
    %1504 = vmatpush1.bf16.msra.mxu0 %v684
    %1505 = vmatprep.subr.bf16.mxu0 0
    %1506 = vmatpush1.bf16.msra.mxu0 %v685
    %1507 = vmatprep.subr.bf16.mxu0 0
    %1508 = vmatpush1.bf16.msra.mxu0 %v686
    %1509 = vmatprep.subr.bf16.mxu0 0
    %1510 = vmatpush1.bf16.msra.mxu0 %v687
    %1511 = vmatprep.subr.bf16.mxu0 0
    %1512 = vmatpush1.bf16.msra.mxu0 %v688
    %1513 = vmatprep.subr.bf16.mxu0 0
    %1514 = vmatpush1.bf16.msra.mxu0 %v689
    %1515 = vmatprep.subr.bf16.mxu0 0
    %1516 = vmatpush1.bf16.msra.mxu0 %v690
    %1517 = vmatprep.subr.bf16.mxu0 0
    %1518 = vmatpush1.bf16.msra.mxu0 %v691
    %1519 = vmatprep.subr.bf16.mxu0 0
    %1520 = vmatpush1.bf16.msra.mxu0 %v692
    %1521 = vmatprep.subr.bf16.mxu0 0
    %1522 = vmatpush1.bf16.msra.mxu0 %v693
    %1523 = vmatprep.subr.bf16.mxu0 0
    %1524 = vmatpush1.bf16.msra.mxu0 %v694
    %1525 = vmatprep.subr.bf16.mxu0 0
    %1526 = vmatpush1.bf16.msra.mxu0 %v695
    %1527 = vmatprep.subr.bf16.mxu0 0
    %1528 = vmatpush1.bf16.msra.mxu0 %v696
    %1529 = vmatprep.mubr.bf16.mxu0 %v1438
    %1530 = vmatmul.mubr.bf16.gmra.mrb[0].mxu0 %v1437
    %v1531 = vpop.f32.mrb[0].mxu0
    %v1532 = vadd.f32 1e-30, %v1531
    %v1533 = vpop.f32.mrb[0].mxu0
    %v1534 = vpop.f32.mrb[0].mxu0
    %v1535 = vadd.f32 1e-30, %v1534
    %v1536 = vpop.f32.mrb[0].mxu0
    %1537 = vdwg.mxu0
    %v1538 = vrcp.pop %v1532
    %v1539 = vrcp.pop %v1535
    %v1540 = vmul.f32 %v1491, %v1538
    %v1541 = vmul.f32 %v1494, %v1539
    %v1542 = vld [vmem:[#allocation5 + $0x200] sm:$0xf]
    %v1543 = vld [vmem:[#allocation5 + $0x208] sm:$0xf]
    %v1544 = vld [vmem:[#allocation5 + $0x210] sm:$0xf]
    %v1545 = vld [vmem:[#allocation5 + $0x218] sm:$0xf]
    %v1546 = vld [vmem:[#allocation5 + $0x220] sm:$0xf]
    %v1547 = vld [vmem:[#allocation5 + $0x228] sm:$0xf]
    %v1548 = vld [vmem:[#allocation5 + $0x230] sm:$0xf]
    %v1549 = vld [vmem:[#allocation5 + $0x238] sm:$0xf]
    %v1550 = vld [vmem:[#allocation7 + $0x23] ss:$0 sm:$0xff]
    %v1551 = vpack.c.bf16 %v1541, %v1540
    %v1560 = vunpack.c.l.b16 %v1542
    %v1561 = vunpack.c.l.b16 %v1543
    %v1562 = vunpack.c.l.b16 %v1544
    %v1563 = vunpack.c.l.b16 %v1545
    %v1564 = vunpack.c.l.b16 %v1546
    %v1565 = vunpack.c.l.b16 %v1547
    %v1566 = vunpack.c.l.b16 %v1548
    %v1567 = vunpack.c.l.b16 %v1549
    %v1568 = vpack.c.b16 %v1561, %v1560
    %v1569 = vpack.c.b16 %v1563, %v1562
    %v1570 = vpack.c.b16 %v1565, %v1564
    %v1571 = vpack.c.b16 %v1567, %v1566
    %v1577 = vsel %vm168, %v1551, 0
    %1579 = vmatprep.subr.bf16.mxu0 0
    %1580 = vmatpush1.bf16.msra.mxu0 %v1568
    %1581 = vmatprep.subr.bf16.mxu0 0
    %1582 = vmatpush1.bf16.msra.mxu0 %v1569
    %1583 = vmatprep.subr.bf16.mxu0 0
    %1584 = vmatpush1.bf16.msra.mxu0 %v1570
    %1585 = vmatprep.subr.bf16.mxu0 0
    %1586 = vmatpush1.bf16.msra.mxu0 %v1571
    %1587 = vmatprep.subr.bf16.mxu0 0
    %1588 = vmatpush1.bf16.msra.mxu0 0
    %1589 = vmatprep.subr.bf16.mxu0 0
    %1590 = vmatpush1.bf16.msra.mxu0 0
    %1591 = vmatprep.subr.bf16.mxu0 0
    %1592 = vmatpush1.bf16.msra.mxu0 0
    %1593 = vmatprep.subr.bf16.mxu0 0
    %1594 = vmatpush1.bf16.msra.mxu0 0
    %1595 = vmatprep.subr.bf16.mxu0 0
    %1596 = vmatpush1.bf16.msra.mxu0 0
    %1597 = vmatprep.subr.bf16.mxu0 0
    %1598 = vmatpush1.bf16.msra.mxu0 0
    %1599 = vmatprep.subr.bf16.mxu0 0
    %1600 = vmatpush1.bf16.msra.mxu0 0
    %1601 = vmatprep.subr.bf16.mxu0 0
    %1602 = vmatpush1.bf16.msra.mxu0 0
    %1603 = vmatprep.subr.bf16.mxu0 0
    %1604 = vmatpush1.bf16.msra.mxu0 0
    %1605 = vmatprep.subr.bf16.mxu0 0
    %1606 = vmatpush1.bf16.msra.mxu0 0
    %1607 = vmatprep.subr.bf16.mxu0 0
    %1608 = vmatpush1.bf16.msra.mxu0 0
    %1609 = vmatprep.subr.bf16.mxu0 0
    %1610 = vmatpush1.bf16.msra.mxu0 0
    %1611 = vmatprep.mubr.bf16.mxu0 0
    %1612 = vmatmul.mubr.bf16.gmra.mrb[0].mxu0 %v1577
    %v1613 = vpop.f32.mrb[0].mxu0
    %v1614 = vadd.f32 %v1550, %v1613
    %v1615 = vpop.f32.mrb[0].mxu0
    %v1616 = vpop.f32.mrb[0].mxu0
    %v1617 = vadd.f32 %v1550, %v1616
    %v1618 = vpop.f32.mrb[0].mxu0
    %1619 = vdwg.mxu0
    %v1620 = vld [vmem:[#allocation7 + $0x26] ss:$0 sm:$0xff]
    %v1621 = vld [vmem:[#allocation7 + $0x27] ss:$0 sm:$0xff]
    %v1622 = vadd.f32 %v974, %v1614
    %v1623 = vadd.f32 %v975, %v1617
    %v1624 = vsel %vm440, %v1622, 0.0
    %1625 = vadd.xlane.f32.xlu0 %v1624
    %v1626 = vpop.xlane.xlu0 %1625
    %v1627 = vsel %vm440, %v1623, 0.0
    %1628 = vadd.xlane.f32.xlu0 %v1627
    %v1629 = vpop.xlane.xlu0 %1628
    %v1630 = vmul.f32 %v1626, %v903
    %v1631 = vmul.f32 %v1629, %v903
    %v1632 = vsub.f32 %v1622, %v1630
    %v1633 = vsub.f32 %v1623, %v1631
    %v1634 = vmul.f32 %v1632, %v1632
    %v1635 = vmul.f32 %v1633, %v1633
    %v1636 = vsel %vm440, %v1634, 0.0
    %1637 = vadd.xlane.f32.xlu0 %v1636
    %v1638 = vpop.xlane.xlu0 %1637
    %v1639 = vsel %vm440, %v1635, 0.0
    %1640 = vadd.xlane.f32.xlu0 %v1639
    %v1641 = vpop.xlane.xlu0 %1640
    %v1642 = vmul.f32 %v1638, %v903
    %v1643 = vmul.f32 %v1641, %v903
    %v1644 = vadd.f32 %v1642, 1e-05
    %v1645 = vadd.f32 %v1643, 1e-05
    %v1646 = vrsqrt.pop %v1644
    %v1647 = vrsqrt.pop %v1645
    %v1648 = vmul.f32 %v1632, %v1646
    %v1649 = vmul.f32 %v1633, %v1647
    %v1650 = vmul.f32 %v1648, %v1620
    %v1651 = vmul.f32 %v1649, %v1620
    %v1652 = vadd.f32 %v1650, %v1621
    %v1653 = vadd.f32 %v1651, %v1621
    %1656 = vrot.lane.b32.xlu0 %v1622, 96
    %v1657 = vpop.permute.xlu0 %1656
    %1658 = vrot.lane.b32.xlu0 %v1623, 96
    %v1659 = vpop.permute.xlu0 %1658
    %v1662 = vsel %vm440, %v1657, 0.0
    %1663 = vadd.xlane.f32.xlu0 %v1662
    %v1664 = vpop.xlane.xlu0 %1663
    %v1665 = vsel %vm440, %v1659, 0.0
    %1666 = vadd.xlane.f32.xlu0 %v1665
    %v1667 = vpop.xlane.xlu0 %1666
    %v1668 = vmul.f32 %v1664, %v903
    %v1669 = vmul.f32 %v1667, %v903
    %v1670 = vsub.f32 %v1622, %v1668
    %v1671 = vsub.f32 %v1623, %v1669
    %v1672 = vmul.f32 %v1670, %v1670
    %v1673 = vmul.f32 %v1671, %v1671
    %1676 = vrot.lane.b32.xlu0 %v1672, 96
    %v1677 = vpop.permute.xlu0 %1676
    %1678 = vrot.lane.b32.xlu0 %v1673, 96
    %v1679 = vpop.permute.xlu0 %1678
    %v1682 = vsel %vm440, %v1677, 0.0
    %1683 = vadd.xlane.f32.xlu0 %v1682
    %v1684 = vpop.xlane.xlu0 %1683
    %v1685 = vsel %vm440, %v1679, 0.0
    %1686 = vadd.xlane.f32.xlu0 %v1685
    %v1687 = vpop.xlane.xlu0 %1686
    %v1688 = vmul.f32 %v1684, %v903
    %v1689 = vmul.f32 %v1687, %v903
    %v1690 = vadd.f32 %v1688, 1e-05
    %v1691 = vadd.f32 %v1689, 1e-05
    %v1692 = vrsqrt.pop %v1690
    %v1693 = vrsqrt.pop %v1691
    %v1694 = vmul.f32 %v1670, %v1692
    %v1695 = vmul.f32 %v1671, %v1693
    %v1696 = vmul.f32 %v1694, %v1620
    %v1697 = vmul.f32 %v1695, %v1620
    %v1698 = vadd.f32 %v1696, %v1621
    %v1699 = vadd.f32 %v1697, %v1621
    %v1700 = vsel %vm440, %v1652, %v1698
    %v1701 = vsel %vm440, %v1653, %v1699
    %v1702 = vld [vmem:[#allocation7 + $0x30] ss:$0 sm:$0xff]
    %v1703 = vld [vmem:[#allocation7 + $0x31] ss:$0 sm:$0xff]
    %v1704 = vsel %vm440, %v1700, 0.0
    %1705 = vadd.xlane.f32.xlu0 %v1704
    %v1706 = vpop.xlane.xlu0 %1705
    %v1707 = vsel %vm440, %v1701, 0.0
    %1708 = vadd.xlane.f32.xlu0 %v1707
    %v1709 = vpop.xlane.xlu0 %1708
    %v1710 = vmul.f32 %v1706, %v903
    %v1711 = vmul.f32 %v1709, %v903
    %v1712 = vsub.f32 %v1700, %v1710
    %v1713 = vsub.f32 %v1701, %v1711
    %v1714 = vmul.f32 %v1712, %v1712
    %v1715 = vmul.f32 %v1713, %v1713
    %v1716 = vsel %vm440, %v1714, 0.0
    %1717 = vadd.xlane.f32.xlu0 %v1716
    %v1718 = vpop.xlane.xlu0 %1717
    %v1719 = vsel %vm440, %v1715, 0.0
    %1720 = vadd.xlane.f32.xlu0 %v1719
    %v1721 = vpop.xlane.xlu0 %1720
    %v1722 = vmul.f32 %v1718, %v903
    %v1723 = vmul.f32 %v1721, %v903
    %v1724 = vadd.f32 %v1722, 1e-05
    %v1725 = vadd.f32 %v1723, 1e-05
    %v1726 = vrsqrt.pop %v1724
    %v1727 = vrsqrt.pop %v1725
    %v1728 = vmul.f32 %v1712, %v1726
    %v1729 = vmul.f32 %v1713, %v1727
    %v1730 = vmul.f32 %v1728, %v1702
    %v1731 = vmul.f32 %v1729, %v1702
    %v1732 = vadd.f32 %v1730, %v1703
    %v1733 = vadd.f32 %v1731, %v1703
    %1736 = vrot.lane.b32.xlu0 %v1700, 96
    %v1737 = vpop.permute.xlu0 %1736
    %1738 = vrot.lane.b32.xlu0 %v1701, 96
    %v1739 = vpop.permute.xlu0 %1738
    %v1742 = vsel %vm440, %v1737, 0.0
    %1743 = vadd.xlane.f32.xlu0 %v1742
    %v1744 = vpop.xlane.xlu0 %1743
    %v1745 = vsel %vm440, %v1739, 0.0
    %1746 = vadd.xlane.f32.xlu0 %v1745
    %v1747 = vpop.xlane.xlu0 %1746
    %v1748 = vmul.f32 %v1744, %v903
    %v1749 = vmul.f32 %v1747, %v903
    %v1750 = vsub.f32 %v1700, %v1748
    %v1751 = vsub.f32 %v1701, %v1749
    %v1752 = vmul.f32 %v1750, %v1750
    %v1753 = vmul.f32 %v1751, %v1751
    %1756 = vrot.lane.b32.xlu0 %v1752, 96
    %v1757 = vpop.permute.xlu0 %1756
    %1758 = vrot.lane.b32.xlu0 %v1753, 96
    %v1759 = vpop.permute.xlu0 %1758
    %v1762 = vsel %vm440, %v1757, 0.0
    %1763 = vadd.xlane.f32.xlu0 %v1762
    %v1764 = vpop.xlane.xlu0 %1763
    %v1765 = vsel %vm440, %v1759, 0.0
    %1766 = vadd.xlane.f32.xlu0 %v1765
    %v1767 = vpop.xlane.xlu0 %1766
    %v1768 = vmul.f32 %v1764, %v903
    %v1769 = vmul.f32 %v1767, %v903
    %v1770 = vadd.f32 %v1768, 1e-05
    %v1771 = vadd.f32 %v1769, 1e-05
    %v1772 = vrsqrt.pop %v1770
    %v1773 = vrsqrt.pop %v1771
    %v1774 = vmul.f32 %v1750, %v1772
    %v1775 = vmul.f32 %v1751, %v1773
    %v1776 = vmul.f32 %v1774, %v1702
    %v1777 = vmul.f32 %v1775, %v1702
    %v1778 = vadd.f32 %v1776, %v1703
    %v1779 = vadd.f32 %v1777, %v1703
    %v1780 = vsel %vm440, %v1732, %v1778
    %v1781 = vsel %vm440, %v1733, %v1779
    %v1782 = vld [vmem:[#allocation5 + $0x240] sm:$0xf]
    %v1783 = vld [vmem:[#allocation5 + $0x248] sm:$0xf]
    %v1784 = vld [vmem:[#allocation5 + $0x250] sm:$0xf]
    %v1785 = vld [vmem:[#allocation5 + $0x258] sm:$0xf]
    %v1786 = vld [vmem:[#allocation5 + $0x260] sm:$0xf]
    %v1787 = vld [vmem:[#allocation5 + $0x268] sm:$0xf]
    %v1788 = vld [vmem:[#allocation5 + $0x270] sm:$0xf]
    %v1789 = vld [vmem:[#allocation5 + $0x278] sm:$0xf]
    %v1790 = vld [vmem:[#allocation7 + $0x32] ss:$0 sm:$0xff]
    %v1791 = vpack.c.bf16 %v1781, %v1780
    %v1800 = vunpack.c.l.b16 %v1782
    %v1801 = vunpack.c.l.b16 %v1783
    %v1802 = vunpack.c.l.b16 %v1784
    %v1803 = vunpack.c.l.b16 %v1785
    %v1804 = vunpack.c.l.b16 %v1786
    %v1805 = vunpack.c.l.b16 %v1787
    %v1806 = vunpack.c.l.b16 %v1788
    %v1807 = vunpack.c.l.b16 %v1789
    %v1808 = vpack.c.b16 %v1801, %v1800
    %v1809 = vpack.c.b16 %v1803, %v1802
    %v1810 = vpack.c.b16 %v1805, %v1804
    %v1811 = vpack.c.b16 %v1807, %v1806
    %v1817 = vsel %vm168, %v1791, 0
    %1819 = vmatprep.subr.bf16.mxu0 0
    %1820 = vmatpush1.bf16.msra.mxu0 %v1808
    %1821 = vmatprep.subr.bf16.mxu0 0
    %1822 = vmatpush1.bf16.msra.mxu0 %v1809
    %1823 = vmatprep.subr.bf16.mxu0 0
    %1824 = vmatpush1.bf16.msra.mxu0 %v1810
    %1825 = vmatprep.subr.bf16.mxu0 0
    %1826 = vmatpush1.bf16.msra.mxu0 %v1811
    %1827 = vmatprep.subr.bf16.mxu0 0
    %1828 = vmatpush1.bf16.msra.mxu0 0
    %1829 = vmatprep.subr.bf16.mxu0 0
    %1830 = vmatpush1.bf16.msra.mxu0 0
    %1831 = vmatprep.subr.bf16.mxu0 0
    %1832 = vmatpush1.bf16.msra.mxu0 0
    %1833 = vmatprep.subr.bf16.mxu0 0
    %1834 = vmatpush1.bf16.msra.mxu0 0
    %1835 = vmatprep.subr.bf16.mxu0 0
    %1836 = vmatpush1.bf16.msra.mxu0 0
    %1837 = vmatprep.subr.bf16.mxu0 0
    %1838 = vmatpush1.bf16.msra.mxu0 0
    %1839 = vmatprep.subr.bf16.mxu0 0
    %1840 = vmatpush1.bf16.msra.mxu0 0
    %1841 = vmatprep.subr.bf16.mxu0 0
    %1842 = vmatpush1.bf16.msra.mxu0 0
    %1843 = vmatprep.subr.bf16.mxu0 0
    %1844 = vmatpush1.bf16.msra.mxu0 0
    %1845 = vmatprep.subr.bf16.mxu0 0
    %1846 = vmatpush1.bf16.msra.mxu0 0
    %1847 = vmatprep.subr.bf16.mxu0 0
    %1848 = vmatpush1.bf16.msra.mxu0 0
    %1849 = vmatprep.subr.bf16.mxu0 0
    %1850 = vmatpush1.bf16.msra.mxu0 0
    %1851 = vmatprep.mubr.bf16.mxu0 0
    %1852 = vmatmul.mubr.bf16.gmra.mrb[0].mxu0 %v1817
    %v1853 = vpop.f32.mrb[0].mxu0
    %v1854 = vadd.f32 %v1790, %v1853
    %v1855 = vpop.f32.mrb[0].mxu0
    %v1856 = vpop.f32.mrb[0].mxu0
    %v1857 = vadd.f32 %v1790, %v1856
    %v1858 = vpop.f32.mrb[0].mxu0
    %1859 = vdwg.mxu0
    %1860 = vst [vmem:[#allocation8] sm:$0xff] %v1854
    %1861 = vst [vmem:[#allocation8 + $0x8] sm:$0xff] %v1857
    %v1862 = vsub.f32 0.0, %v1854
    %v1863 = vsub.f32 0.0, %v1857
    %v1864 = vmul.f32 %v1862, 1.442695
    %v1865 = vpow.pop %v1864
    %v1866 = vmul.f32 %v1863, 1.442695
    %v1867 = vpow.pop %v1866
    %v1868 = vmul.f32 %v1865, 1.2
    %v1869 = vmul.f32 %v1867, 1.2
    %1872 = vrot.lane.b32.xlu0 %v1868, 96
    %v1873 = vpop.permute.xlu0 %1872
    %1874 = vrot.lane.b32.xlu0 %v1869, 96
    %v1875 = vpop.permute.xlu0 %1874
    %v1878 = vadd.f32 %v1868, %v1873
    %v1879 = vadd.f32 %v1869, %v1875
    %v1880 = vadd.f32 %v1878, 1e-08
    %v1881 = vadd.f32 %v1879, 1e-08
    %v1882 = vrcp.pop %v1880
    %v1883 = vrcp.pop %v1881
    %v1884 = vmul.f32 %v1868, %v1882
    %v1885 = vmul.f32 %v1869, %v1883
    %1888 = vrot.lane.b32.xlu0 %v1882, 32
    %v1889 = vpop.permute.xlu0 %1888
    %1890 = vrot.lane.b32.xlu0 %v1883, 32
    %v1891 = vpop.permute.xlu0 %1890
    %v1894 = vmul.f32 %v1868, %v1889
    %v1895 = vmul.f32 %v1869, %v1891
    %1898 = vrot.lane.b32.xlu0 %v1854, 64
    %v1899 = vpop.permute.xlu0 %1898
    %1900 = vrot.lane.b32.xlu0 %v1857, 64
    %v1901 = vpop.permute.xlu0 %1900
    %v1904 = vmul.f32 %v1884, %v1899
    %v1905 = vmul.f32 %v1885, %v1901
    %v1906 = vmul.f32 %v1894, %v1899
    %v1907 = vmul.f32 %v1895, %v1901
    %1910 = vrot.lane.b32.xlu0 %v1906, 96
    %v1911 = vpop.permute.xlu0 %1910
    %1912 = vrot.lane.b32.xlu0 %v1907, 96
    %v1913 = vpop.permute.xlu0 %1912
    %v1916 = vadd.f32 %v1904, %v1911
    %v1917 = vadd.f32 %v1905, %v1913
    %v1918 = vld [vmem:[#allocation5 + $0x280] sm:$0xf]
    %v1919 = vld [vmem:[#allocation5 + $0x288] sm:$0xf]
    %v1920 = vld [vmem:[#allocation5 + $0x290] sm:$0xf]
    %v1921 = vld [vmem:[#allocation5 + $0x298] sm:$0xf]
    %v1922 = vld [vmem:[#allocation7 + $0x33] ss:$0 sm:$0xff]
    %v1923 = vpack.c.bf16 %v1917, %v1916
    %1925 = vrot.lane.b32.xlu0 %v1923, 64
    %v1926 = vpop.permute.xlu0 %1925
    %v1931 = vunpack.c.l.b16 %v1918
    %v1932 = vunpack.c.l.b16 %v1919
    %v1933 = vunpack.c.l.b16 %v1920
    %v1934 = vunpack.c.l.b16 %v1921
    %v1935 = vpack.c.b16 %v1932, %v1931
    %v1936 = vpack.c.b16 %v1934, %v1933
    %v1940 = vsel %vm440, %v1926, 0
    %1942 = vmatprep.subr.bf16.mxu0 0
    %1943 = vmatpush1.bf16.msra.mxu0 %v1935
    %1944 = vmatprep.subr.bf16.mxu0 0
    %1945 = vmatpush1.bf16.msra.mxu0 %v1936
    %1946 = vmatprep.subr.bf16.mxu0 0
    %1947 = vmatpush1.bf16.msra.mxu0 0
    %1948 = vmatprep.subr.bf16.mxu0 0
    %1949 = vmatpush1.bf16.msra.mxu0 0
    %1950 = vmatprep.subr.bf16.mxu0 0
    %1951 = vmatpush1.bf16.msra.mxu0 0
    %1952 = vmatprep.subr.bf16.mxu0 0
    %1953 = vmatpush1.bf16.msra.mxu0 0
    %1954 = vmatprep.subr.bf16.mxu0 0
    %1955 = vmatpush1.bf16.msra.mxu0 0
    %1956 = vmatprep.subr.bf16.mxu0 0
    %1957 = vmatpush1.bf16.msra.mxu0 0
    %1958 = vmatprep.subr.bf16.mxu0 0
    %1959 = vmatpush1.bf16.msra.mxu0 0
    %1960 = vmatprep.subr.bf16.mxu0 0
    %1961 = vmatpush1.bf16.msra.mxu0 0
    %1962 = vmatprep.subr.bf16.mxu0 0
    %1963 = vmatpush1.bf16.msra.mxu0 0
    %1964 = vmatprep.subr.bf16.mxu0 0
    %1965 = vmatpush1.bf16.msra.mxu0 0
    %1966 = vmatprep.subr.bf16.mxu0 0
    %1967 = vmatpush1.bf16.msra.mxu0 0
    %1968 = vmatprep.subr.bf16.mxu0 0
    %1969 = vmatpush1.bf16.msra.mxu0 0
    %1970 = vmatprep.subr.bf16.mxu0 0
    %1971 = vmatpush1.bf16.msra.mxu0 0
    %1972 = vmatprep.subr.bf16.mxu0 0
    %1973 = vmatpush1.bf16.msra.mxu0 0
    %1974 = vmatprep.mubr.bf16.mxu0 0
    %1975 = vmatmul.mubr.bf16.gmra.mrb[0].mxu0 %v1940
    %v1976 = vpop.f32.mrb[0].mxu0
    %v1977 = vadd.f32 %v1922, %v1976
    %v1978 = vpop.f32.mrb[0].mxu0
    %v1979 = vpop.f32.mrb[0].mxu0
    %v1980 = vadd.f32 %v1922, %v1979
    %v1981 = vpop.f32.mrb[0].mxu0
    %1982 = vdwg.mxu0
    %v1983 = vmax.f32 %v1977, 0.0
    %v1984 = vmax.f32 %v1980, 0.0
    %v1985 = vpack.c.bf16 %v1984, %v1983
    %1986 = vrot.lane.b32.xlu0 %v1935, 96
    %v1987 = vpop.permute.xlu0 %1986
    %1988 = vrot.lane.b32.xlu0 %v1936, 96
    %v1989 = vpop.permute.xlu0 %1988
    %1993 = vrot.lane.b32.xlu0 %v1922, 96
    %v1994 = vpop.permute.xlu0 %1993
    %v1997 = vsel %vm440, %v1985, 0
    %1999 = vmatprep.subr.bf16.mxu0 0
    %2000 = vmatpush1.bf16.msra.mxu0 %v1987
    %2001 = vmatprep.subr.bf16.mxu0 0
    %2002 = vmatpush1.bf16.msra.mxu0 %v1989
    %2003 = vmatprep.subr.bf16.mxu0 0
    %2004 = vmatpush1.bf16.msra.mxu0 0
    %2005 = vmatprep.subr.bf16.mxu0 0
    %2006 = vmatpush1.bf16.msra.mxu0 0
    %2007 = vmatprep.subr.bf16.mxu0 0
    %2008 = vmatpush1.bf16.msra.mxu0 0
    %2009 = vmatprep.subr.bf16.mxu0 0
    %2010 = vmatpush1.bf16.msra.mxu0 0
    %2011 = vmatprep.subr.bf16.mxu0 0
    %2012 = vmatpush1.bf16.msra.mxu0 0
    %2013 = vmatprep.subr.bf16.mxu0 0
    %2014 = vmatpush1.bf16.msra.mxu0 0
    %2015 = vmatprep.subr.bf16.mxu0 0
    %2016 = vmatpush1.bf16.msra.mxu0 0
    %2017 = vmatprep.subr.bf16.mxu0 0
    %2018 = vmatpush1.bf16.msra.mxu0 0
    %2019 = vmatprep.subr.bf16.mxu0 0
    %2020 = vmatpush1.bf16.msra.mxu0 0
    %2021 = vmatprep.subr.bf16.mxu0 0
    %2022 = vmatpush1.bf16.msra.mxu0 0
    %2023 = vmatprep.subr.bf16.mxu0 0
    %2024 = vmatpush1.bf16.msra.mxu0 0
    %2025 = vmatprep.subr.bf16.mxu0 0
    %2026 = vmatpush1.bf16.msra.mxu0 0
    %2027 = vmatprep.subr.bf16.mxu0 0
    %2028 = vmatpush1.bf16.msra.mxu0 0
    %2029 = vmatprep.subr.bf16.mxu0 0
    %2030 = vmatpush1.bf16.msra.mxu0 0
    %2031 = vmatprep.mubr.bf16.mxu0 0
    %2032 = vmatmul.mubr.bf16.gmra.mrb[0].mxu0 %v1997
    %v2033 = vpop.f32.mrb[0].mxu0
    %v2034 = vadd.f32 %v1994, %v2033
    %v2035 = vpop.f32.mrb[0].mxu0
    %v2036 = vpop.f32.mrb[0].mxu0
    %v2037 = vadd.f32 %v1994, %v2036
    %v2038 = vpop.f32.mrb[0].mxu0
    %2039 = vdwg.mxu0
    %v2040 = vmul.f32 %v2034, 0.5
    %v2041 = vmul.f32 %v2037, 0.5
    %2044 = vrot.lane.b32.xlu0 %v2040, 64
    %v2045 = vpop.permute.xlu0 %2044
    %2046 = vrot.lane.b32.xlu0 %v2041, 64
    %v2047 = vpop.permute.xlu0 %2046
    %v2050 = vsub.f32 %v1916, %v2045
    %v2051 = vsub.f32 %v1917, %v2047
    %v2052 = vld [vmem:[#allocation5 + $0x2a0] sm:$0xf]
    %v2053 = vld [vmem:[#allocation5 + $0x2a8] sm:$0xf]
    %v2054 = vld [vmem:[#allocation5 + $0x2b0] sm:$0xf]
    %v2055 = vld [vmem:[#allocation5 + $0x2b8] sm:$0xf]
    %v2056 = vld [vmem:[#allocation7 + $0x34] ss:$0 sm:$0xff]
    %v2057 = vpack.c.bf16 %v2051, %v2050
    %2059 = vrot.lane.b32.xlu0 %v2057, 64
    %v2060 = vpop.permute.xlu0 %2059
    %v2065 = vunpack.c.l.b16 %v2052
    %v2066 = vunpack.c.l.b16 %v2053
    %v2067 = vunpack.c.l.b16 %v2054
    %v2068 = vunpack.c.l.b16 %v2055
    %v2069 = vpack.c.b16 %v2066, %v2065
    %v2070 = vpack.c.b16 %v2068, %v2067
    %v2074 = vsel %vm440, %v2060, 0
    %2076 = vmatprep.subr.bf16.mxu0 0
    %2077 = vmatpush1.bf16.msra.mxu0 %v2069
    %2078 = vmatprep.subr.bf16.mxu0 0
    %2079 = vmatpush1.bf16.msra.mxu0 %v2070
    %2080 = vmatprep.subr.bf16.mxu0 0
    %2081 = vmatpush1.bf16.msra.mxu0 0
    %2082 = vmatprep.subr.bf16.mxu0 0
    %2083 = vmatpush1.bf16.msra.mxu0 0
    %2084 = vmatprep.subr.bf16.mxu0 0
    %2085 = vmatpush1.bf16.msra.mxu0 0
    %2086 = vmatprep.subr.bf16.mxu0 0
    %2087 = vmatpush1.bf16.msra.mxu0 0
    %2088 = vmatprep.subr.bf16.mxu0 0
    %2089 = vmatpush1.bf16.msra.mxu0 0
    %2090 = vmatprep.subr.bf16.mxu0 0
    %2091 = vmatpush1.bf16.msra.mxu0 0
    %2092 = vmatprep.subr.bf16.mxu0 0
    %2093 = vmatpush1.bf16.msra.mxu0 0
    %2094 = vmatprep.subr.bf16.mxu0 0
    %2095 = vmatpush1.bf16.msra.mxu0 0
    %2096 = vmatprep.subr.bf16.mxu0 0
    %2097 = vmatpush1.bf16.msra.mxu0 0
    %2098 = vmatprep.subr.bf16.mxu0 0
    %2099 = vmatpush1.bf16.msra.mxu0 0
    %2100 = vmatprep.subr.bf16.mxu0 0
    %2101 = vmatpush1.bf16.msra.mxu0 0
    %2102 = vmatprep.subr.bf16.mxu0 0
    %2103 = vmatpush1.bf16.msra.mxu0 0
    %2104 = vmatprep.subr.bf16.mxu0 0
    %2105 = vmatpush1.bf16.msra.mxu0 0
    %2106 = vmatprep.subr.bf16.mxu0 0
    %2107 = vmatpush1.bf16.msra.mxu0 0
    %2108 = vmatprep.mubr.bf16.mxu0 0
    %2109 = vmatmul.mubr.bf16.gmra.mrb[0].mxu0 %v2074
    %v2110 = vpop.f32.mrb[0].mxu0
    %v2111 = vadd.f32 %v2056, %v2110
    %v2112 = vpop.f32.mrb[0].mxu0
    %v2113 = vpop.f32.mrb[0].mxu0
    %v2114 = vadd.f32 %v2056, %v2113
    %v2115 = vpop.f32.mrb[0].mxu0
    %2116 = vdwg.mxu0
    %v2117 = vmax.f32 %v2111, 0.0
    %v2118 = vmax.f32 %v2114, 0.0
    %v2119 = vpack.c.bf16 %v2118, %v2117
    %2120 = vrot.lane.b32.xlu0 %v2069, 96
    %v2121 = vpop.permute.xlu0 %2120
    %2122 = vrot.lane.b32.xlu0 %v2070, 96
    %v2123 = vpop.permute.xlu0 %2122
    %2127 = vrot.lane.b32.xlu0 %v2056, 96
    %v2128 = vpop.permute.xlu0 %2127
    %v2131 = vsel %vm440, %v2119, 0
    %2133 = vmatprep.subr.bf16.mxu0 0
    %2134 = vmatpush1.bf16.msra.mxu0 %v2121
    %2135 = vmatprep.subr.bf16.mxu0 0
    %2136 = vmatpush1.bf16.msra.mxu0 %v2123
    %2137 = vmatprep.subr.bf16.mxu0 0
    %2138 = vmatpush1.bf16.msra.mxu0 0
    %2139 = vmatprep.subr.bf16.mxu0 0
    %2140 = vmatpush1.bf16.msra.mxu0 0
    %2141 = vmatprep.subr.bf16.mxu0 0
    %2142 = vmatpush1.bf16.msra.mxu0 0
    %2143 = vmatprep.subr.bf16.mxu0 0
    %2144 = vmatpush1.bf16.msra.mxu0 0
    %2145 = vmatprep.subr.bf16.mxu0 0
    %2146 = vmatpush1.bf16.msra.mxu0 0
    %2147 = vmatprep.subr.bf16.mxu0 0
    %2148 = vmatpush1.bf16.msra.mxu0 0
    %2149 = vmatprep.subr.bf16.mxu0 0
    %2150 = vmatpush1.bf16.msra.mxu0 0
    %2151 = vmatprep.subr.bf16.mxu0 0
    %2152 = vmatpush1.bf16.msra.mxu0 0
    %2153 = vmatprep.subr.bf16.mxu0 0
    %2154 = vmatpush1.bf16.msra.mxu0 0
    %2155 = vmatprep.subr.bf16.mxu0 0
    %2156 = vmatpush1.bf16.msra.mxu0 0
    %2157 = vmatprep.subr.bf16.mxu0 0
    %2158 = vmatpush1.bf16.msra.mxu0 0
    %2159 = vmatprep.subr.bf16.mxu0 0
    %2160 = vmatpush1.bf16.msra.mxu0 0
    %2161 = vmatprep.subr.bf16.mxu0 0
    %2162 = vmatpush1.bf16.msra.mxu0 0
    %2163 = vmatprep.subr.bf16.mxu0 0
    %2164 = vmatpush1.bf16.msra.mxu0 0
    %2165 = vmatprep.mubr.bf16.mxu0 0
    %2166 = vmatmul.mubr.bf16.gmra.mrb[0].mxu0 %v2131
    %v2167 = vpop.f32.mrb[0].mxu0
    %v2168 = vadd.f32 %v2128, %v2167
    %v2169 = vpop.f32.mrb[0].mxu0
    %v2170 = vpop.f32.mrb[0].mxu0
    %v2171 = vadd.f32 %v2128, %v2170
    %v2172 = vpop.f32.mrb[0].mxu0
    %2173 = vdwg.mxu0
    %v2174 = vmul.f32 %v2168, 0.5
    %v2175 = vmul.f32 %v2171, 0.5
    %2178 = vrot.lane.b32.xlu0 %v2174, 64
    %v2179 = vpop.permute.xlu0 %2178
    %2180 = vrot.lane.b32.xlu0 %v2175, 64
    %v2181 = vpop.permute.xlu0 %2180
    %v2184 = vsub.f32 %v2050, %v2179
    %v2185 = vsub.f32 %v2051, %v2181
    %v2186 = vld [vmem:[#allocation5 + $0x2c0] sm:$0xf]
    %v2187 = vld [vmem:[#allocation5 + $0x2c8] sm:$0xf]
    %v2188 = vld [vmem:[#allocation5 + $0x2d0] sm:$0xf]
    %v2189 = vld [vmem:[#allocation5 + $0x2d8] sm:$0xf]
    %v2190 = vld [vmem:[#allocation7 + $0x35] ss:$0 sm:$0xff]
    %v2191 = vpack.c.bf16 %v2185, %v2184
    %2193 = vrot.lane.b32.xlu0 %v2191, 64
    %v2194 = vpop.permute.xlu0 %2193
    %v2199 = vunpack.c.l.b16 %v2186
    %v2200 = vunpack.c.l.b16 %v2187
    %v2201 = vunpack.c.l.b16 %v2188
    %v2202 = vunpack.c.l.b16 %v2189
    %v2203 = vpack.c.b16 %v2200, %v2199
    %v2204 = vpack.c.b16 %v2202, %v2201
    %v2208 = vsel %vm440, %v2194, 0
    %2210 = vmatprep.subr.bf16.mxu0 0
    %2211 = vmatpush1.bf16.msra.mxu0 %v2203
    %2212 = vmatprep.subr.bf16.mxu0 0
    %2213 = vmatpush1.bf16.msra.mxu0 %v2204
    %2214 = vmatprep.subr.bf16.mxu0 0
    %2215 = vmatpush1.bf16.msra.mxu0 0
    %2216 = vmatprep.subr.bf16.mxu0 0
    %2217 = vmatpush1.bf16.msra.mxu0 0
    %2218 = vmatprep.subr.bf16.mxu0 0
    %2219 = vmatpush1.bf16.msra.mxu0 0
    %2220 = vmatprep.subr.bf16.mxu0 0
    %2221 = vmatpush1.bf16.msra.mxu0 0
    %2222 = vmatprep.subr.bf16.mxu0 0
    %2223 = vmatpush1.bf16.msra.mxu0 0
    %2224 = vmatprep.subr.bf16.mxu0 0
    %2225 = vmatpush1.bf16.msra.mxu0 0
    %2226 = vmatprep.subr.bf16.mxu0 0
    %2227 = vmatpush1.bf16.msra.mxu0 0
    %2228 = vmatprep.subr.bf16.mxu0 0
    %2229 = vmatpush1.bf16.msra.mxu0 0
    %2230 = vmatprep.subr.bf16.mxu0 0
    %2231 = vmatpush1.bf16.msra.mxu0 0
    %2232 = vmatprep.subr.bf16.mxu0 0
    %2233 = vmatpush1.bf16.msra.mxu0 0
    %2234 = vmatprep.subr.bf16.mxu0 0
    %2235 = vmatpush1.bf16.msra.mxu0 0
    %2236 = vmatprep.subr.bf16.mxu0 0
    %2237 = vmatpush1.bf16.msra.mxu0 0
    %2238 = vmatprep.subr.bf16.mxu0 0
    %2239 = vmatpush1.bf16.msra.mxu0 0
    %2240 = vmatprep.subr.bf16.mxu0 0
    %2241 = vmatpush1.bf16.msra.mxu0 0
    %2242 = vmatprep.mubr.bf16.mxu0 0
    %2243 = vmatmul.mubr.bf16.gmra.mrb[0].mxu0 %v2208
    %v2244 = vpop.f32.mrb[0].mxu0
    %v2245 = vadd.f32 %v2190, %v2244
    %v2246 = vpop.f32.mrb[0].mxu0
    %v2247 = vpop.f32.mrb[0].mxu0
    %v2248 = vadd.f32 %v2190, %v2247
    %v2249 = vpop.f32.mrb[0].mxu0
    %2250 = vdwg.mxu0
    %v2251 = vmax.f32 %v2245, 0.0
    %v2252 = vmax.f32 %v2248, 0.0
    %v2253 = vpack.c.bf16 %v2252, %v2251
    %2254 = vrot.lane.b32.xlu0 %v2203, 96
    %v2255 = vpop.permute.xlu0 %2254
    %2256 = vrot.lane.b32.xlu0 %v2204, 96
    %v2257 = vpop.permute.xlu0 %2256
    %2261 = vrot.lane.b32.xlu0 %v2190, 96
    %v2262 = vpop.permute.xlu0 %2261
    %v2265 = vsel %vm440, %v2253, 0
    %2267 = vmatprep.subr.bf16.mxu0 0
    %2268 = vmatpush1.bf16.msra.mxu0 %v2255
    %2269 = vmatprep.subr.bf16.mxu0 0
    %2270 = vmatpush1.bf16.msra.mxu0 %v2257
    %2271 = vmatprep.subr.bf16.mxu0 0
    %2272 = vmatpush1.bf16.msra.mxu0 0
    %2273 = vmatprep.subr.bf16.mxu0 0
    %2274 = vmatpush1.bf16.msra.mxu0 0
    %2275 = vmatprep.subr.bf16.mxu0 0
    %2276 = vmatpush1.bf16.msra.mxu0 0
    %2277 = vmatprep.subr.bf16.mxu0 0
    %2278 = vmatpush1.bf16.msra.mxu0 0
    %2279 = vmatprep.subr.bf16.mxu0 0
    %2280 = vmatpush1.bf16.msra.mxu0 0
    %2281 = vmatprep.subr.bf16.mxu0 0
    %2282 = vmatpush1.bf16.msra.mxu0 0
    %2283 = vmatprep.subr.bf16.mxu0 0
    %2284 = vmatpush1.bf16.msra.mxu0 0
    %2285 = vmatprep.subr.bf16.mxu0 0
    %2286 = vmatpush1.bf16.msra.mxu0 0
    %2287 = vmatprep.subr.bf16.mxu0 0
    %2288 = vmatpush1.bf16.msra.mxu0 0
    %2289 = vmatprep.subr.bf16.mxu0 0
    %2290 = vmatpush1.bf16.msra.mxu0 0
    %2291 = vmatprep.subr.bf16.mxu0 0
    %2292 = vmatpush1.bf16.msra.mxu0 0
    %2293 = vmatprep.subr.bf16.mxu0 0
    %2294 = vmatpush1.bf16.msra.mxu0 0
    %2295 = vmatprep.subr.bf16.mxu0 0
    %2296 = vmatpush1.bf16.msra.mxu0 0
    %2297 = vmatprep.subr.bf16.mxu0 0
    %2298 = vmatpush1.bf16.msra.mxu0 0
    %2299 = vmatprep.mubr.bf16.mxu0 0
    %2300 = vmatmul.mubr.bf16.gmra.mrb[0].mxu0 %v2265
    %v2301 = vpop.f32.mrb[0].mxu0
    %v2302 = vadd.f32 %v2262, %v2301
    %v2303 = vpop.f32.mrb[0].mxu0
    %v2304 = vpop.f32.mrb[0].mxu0
    %v2305 = vadd.f32 %v2262, %v2304
    %v2306 = vpop.f32.mrb[0].mxu0
    %2307 = vdwg.mxu0
    %v2308 = vmul.f32 %v2302, 0.5
    %v2309 = vmul.f32 %v2305, 0.5
    %2312 = vrot.lane.b32.xlu0 %v2308, 64
    %v2313 = vpop.permute.xlu0 %2312
    %2314 = vrot.lane.b32.xlu0 %v2309, 64
    %v2315 = vpop.permute.xlu0 %2314
    %v2318 = vsub.f32 %v2184, %v2313
    %v2319 = vsub.f32 %v2185, %v2315
    %v2320 = vld [vmem:[#allocation7 + $0x36] ss:$0 sm:$0xff]
    %v2321 = vld [vmem:[#allocation7 + $0x37] ss:$0 sm:$0xff]
    %2323 = vrot.lane.b32.xlu0 %v2320, 64
    %v2324 = vpop.permute.xlu0 %2323
    %v2326 = vmul.f32 %v2318, %v2324
    %v2327 = vmul.f32 %v2319, %v2324
    %2330 = vrot.lane.b32.xlu0 %v2326, 64
    %v2331 = vpop.permute.xlu0 %2330
    %2332 = vrot.lane.b32.xlu0 %v2327, 64
    %v2333 = vpop.permute.xlu0 %2332
    %v2336 = vsel %vm440, %v2331, 0.0
    %2337 = vadd.xlane.f32.xlu0 %v2336
    %v2338 = vpop.xlane.xlu0 %2337
    %v2339 = vsel %vm440, %v2333, 0.0
    %2340 = vadd.xlane.f32.xlu0 %v2339
    %v2341 = vpop.xlane.xlu0 %2340
    %v2342 = vadd.f32 %v2338, %v2320
    %v2343 = vadd.f32 %v2341, %v2320
    %2345 = vset.pattern.permute.xlu0 32
    %2346 = vperm.xlu0 %2345, %v2342
    %v2347 = vpop.permute.xlu0 %2346
    %2350 = vset.pattern.permute.xlu0 32
    %2351 = vperm.xlu0 %2350, %v2343
    %v2352 = vpop.permute.xlu0 %2351
    %v2354 = vmul.f32 %v2347, %v2321
    %v2355 = vmul.f32 %v2352, %v2321
    %2358 = vrot.lane.b32.xlu0 %v2318, 64
    %v2359 = vpop.permute.xlu0 %2358
    %2360 = vrot.lane.b32.xlu0 %v2319, 64
    %v2361 = vpop.permute.xlu0 %2360
    %2366 = vrot.lane.b32.xlu0 %v1884, 96
    %v2367 = vpop.permute.xlu0 %2366
    %2368 = vrot.lane.b32.xlu0 %v1885, 96
    %v2369 = vpop.permute.xlu0 %2368
    %2374 = vrot.lane.b32.xlu0 %v1894, 96
    %v2375 = vpop.permute.xlu0 %2374
    %2376 = vrot.lane.b32.xlu0 %v1895, 96
    %v2377 = vpop.permute.xlu0 %2376
    %2382 = vrot.lane.b32.xlu0 %v2354, 96
    %v2383 = vpop.permute.xlu0 %2382
    %2384 = vrot.lane.b32.xlu0 %v2355, 96
    %v2385 = vpop.permute.xlu0 %2384
    %v2388 = vsel %vm440, %v2359, %v2367
    %v2389 = vsel %vm440, %v2361, %v2369
    %v2390 = vsel %vm168, %v2388, %v2375
    %v2391 = vsel %vm168, %v2389, %v2377
    %v2392 = vsel %vm475, %v2390, %v2383
    %v2393 = vsel %vm475, %v2391, %v2385
    %2394 = vst [vmem:[#allocation9] sm:$0xff] %v2392
    %2395 = vst [vmem:[#allocation9 + $0x8] sm:$0xff] %v2393
    // Predicated region
    $region26: #{tpu_custom_call.1} parent=1 // pred_check
      _
    $region27: #{tpu_custom_call.1} parent=1 // pred_check_branch
      %2397 = sbr.rel (0) target = $region29
    $region28: #{tpu_custom_call.1} parent=1 // pred_region
      %s2399 = ssub.s32 256, 256
      %2400 = vsyncadd [#allocation4], %s2399
      %s2401 = sshll.u32 [#allocation8], 4
      %s2402 = int_to_ptr.vmem [resolvable:$true] %s2401
      %2407 = dma.vmem_to_hbm [thread:$0]  %s2402, 256, %s3, [#allocation4], 128, 128, 8
    $region29: #{tpu_custom_call.1} parent=1 // pred_fallthru
      _
    // Predicated region
    $region30: #{tpu_custom_call.1} parent=1 // pred_check
      _
    $region31: #{tpu_custom_call.1} parent=1 // pred_check_branch
      %2409 = sbr.rel (0) target = $region33
    $region32: #{tpu_custom_call.1} parent=1 // pred_region
      %s2411 = ssub.s32 256, 256
      %2412 = vsyncadd [#allocation10], %s2411
      %s2413 = sshll.u32 [#allocation9], 4
      %s2414 = int_to_ptr.vmem [resolvable:$true] %s2413
      %2419 = dma.vmem_to_hbm [thread:$0]  %s2414, 256, %s4, [#allocation10], 128, 128, 8
    $region33: #{tpu_custom_call.1} parent=1 // pred_fallthru
      _
    // Predicated region
    $region34: #{tpu_custom_call.1} parent=1 // pred_check
      _
    $region35: #{tpu_custom_call.1} parent=1 // pred_check_branch
      %2421 = sbr.rel (0) target = $region37
    $region36: #{tpu_custom_call.1} parent=1 // pred_region
      %2422 = dma.done [#allocation4], 256
    $region37: #{tpu_custom_call.1} parent=1 // pred_fallthru
      _
    // Predicated region
    $region38: #{tpu_custom_call.1} parent=1 // pred_check
      _
    $region39: #{tpu_custom_call.1} parent=1 // pred_check_branch
      %2424 = sbr.rel (0) target = $region41
    $region40: #{tpu_custom_call.1} parent=1 // pred_region
      %2425 = dma.done [#allocation10], 256
    $region41: #{tpu_custom_call.1} parent=1 // pred_fallthru
      _
    %2426 = vsyncpa [#allocation3], 1
    %2427 = vsyncpa [#allocation6], 1
    %2428 = vsyncpa [#allocation4], 1
    %2429 = vsyncpa [#allocation10], 1

</llo_original>
